<compile_context>
chip_gen: v5e
topology: v5e:2x2
jax: 0.10.0
libtpu: 0.0.40
codegen_flags: <defaults>
</compile_context>

<pallas_src>
import functools

import numpy as np
import jax
import jax.numpy as jnp
from jax import lax
from jax.experimental import pallas as pl
from jax.experimental.pallas import tpu as pltpu

# ----------------------------- model sizes ---------------------------------
CHROMA_BINS   = 12
CHROMA_LEN    = 200            # get_chroma_interval(..., chroma_len=200)
BEAT_NOTE_LEN = 2000           # get_beat_note_interval(..., beat_note_len=2000)
CHROMA_FLAT   = CHROMA_BINS * CHROMA_LEN   # 2400
ENC_C         = 128            # chroma encoding width
ENC_B         = 128            # beat-note encoding width
ACOUSTIC      = ENC_C + ENC_B  # 256
EMB           = 128            # token embedding width
XDIM          = EMB + ACOUSTIC # 384
HID           = 128            # decoder GRU hidden size
GATES         = 3 * HID        # fused gates [z | r | n]
VOCAB         = 128            # token 43 (stop) is a valid class
STOP_TOKEN    = 43
A_COLS        = GATES + 128    # token table lanes: [gx (384) | beat (1) | pad] -> 512
ENC_TILE      = 16             # bf16 sublane-packed position tile for the encoder grid


def _ceil_mult(x, m):
    return ((x + m - 1) // m) * m


# ======================= encoder kernel (gridded, bf16) ======================
def encode_kernel(cw_ref, bw_ref, wc_ref, bc_ref, wb_ref, bb_ref,
                  wxa_c_ref, wxa_b_ref, btbl_ref):
    """Per position tile: B = relu([cw@Wc+bc | bw@Wb+bb]) @ Wxa  (bf16 in/out)."""
    f32 = jnp.float32
    bf16 = jnp.bfloat16
    c_enc = jnp.maximum(
        jnp.dot(cw_ref[...], wc_ref[...], preferred_element_type=f32) + bc_ref[...], 0.0)
    b_enc = jnp.maximum(
        jnp.dot(bw_ref[...], wb_ref[...], preferred_element_type=f32) + bb_ref[...], 0.0)
    # acoustic = concat(c_enc, b_enc); Wxa is split row-wise so no concat is needed.
    btbl = (jnp.dot(c_enc.astype(bf16), wxa_c_ref[...], preferred_element_type=f32)
            + jnp.dot(b_enc.astype(bf16), wxa_b_ref[...], preferred_element_type=f32))
    btbl_ref[...] = btbl.astype(btbl_ref.dtype)


@functools.lru_cache(maxsize=None)
def make_encode_fn(n_pos_pad):
    grid = (n_pos_pad // ENC_TILE,)
    enc_bytes = ((CHROMA_FLAT * ENC_C + BEAT_NOTE_LEN * ENC_B + ACOUSTIC * GATES) * 2
                 + 2 * 2 * ENC_TILE * (CHROMA_FLAT + BEAT_NOTE_LEN) * 2
                 + 2 * ENC_TILE * GATES * 2
                 + (ENC_C + ENC_B) * 4)
    vmem_limit = min(int(enc_bytes * 3 + (8 << 20)), 48 << 20)
    return jax.jit(pl.pallas_call(
        encode_kernel,
        out_shape=jax.ShapeDtypeStruct((n_pos_pad, GATES), jnp.bfloat16),
        grid=grid,
        in_specs=[
            pl.BlockSpec((ENC_TILE, CHROMA_FLAT), lambda i: (i, 0)),
            pl.BlockSpec((ENC_TILE, BEAT_NOTE_LEN), lambda i: (i, 0)),
            pl.BlockSpec((CHROMA_FLAT, ENC_C), lambda i: (0, 0)),
            pl.BlockSpec((1, ENC_C), lambda i: (0, 0)),
            pl.BlockSpec((BEAT_NOTE_LEN, ENC_B), lambda i: (0, 0)),
            pl.BlockSpec((1, ENC_B), lambda i: (0, 0)),
            pl.BlockSpec((ENC_C, GATES), lambda i: (0, 0)),
            pl.BlockSpec((ENC_B, GATES), lambda i: (0, 0)),
        ],
        out_specs=pl.BlockSpec((ENC_TILE, GATES), lambda i: (i, 0)),
        compiler_params=pltpu.CompilerParams(
            dimension_semantics=("parallel",), vmem_limit_bytes=vmem_limit),
    ))


# ===================== decoder kernel (sequential chunk) =====================
def decode_kernel(kmax_ref,                                           # SMEM scalar
                  a_tbl_ref, b_tbl_ref, wh_ref, bh_ref, wout_ref, bout_ref,
                  h0_ref, k0_ref, arow0_ref, brow0_ref, act0_ref,     # state in
                  logp_ref, tok_ref,                                  # per-step outputs
                  h_out_ref, k_out_ref, arow_out_ref, brow_out_ref,   # state out
                  act_out_ref, nsteps_ref):
    f32, i32, bf16 = jnp.float32, jnp.int32, jnp.bfloat16
    chunk = logp_ref.shape[0]
    n_pos_pad = b_tbl_ref.shape[0]

    kmax_v = jnp.full((1, 1), kmax_ref[0], i32)
    voc_iota = lax.broadcasted_iota(i32, (1, VOCAB), 1)
    voc_iota_f = voc_iota.astype(f32)
    pos_iota = lax.broadcasted_iota(i32, (1, n_pos_pad), 1)

    def sel(active11, new, old):
        m = jnp.broadcast_to(active11, new.shape).astype(new.dtype)
        return m * new + (1 - m) * old

    def body(i, carry):
        h, k, arow, brow, active, nsteps = carry

        # gx = A[prev_tok] + B[k]  (both rows carried from the previous step)
        gx = arow + brow                                                      # [1, 3H] f32
        gh = jnp.dot(h.astype(bf16), wh_ref[...],
                     preferred_element_type=f32) + bh_ref[...]                # [1, 3H]
        z = jax.nn.sigmoid(gx[:, 0:HID] + gh[:, 0:HID])
        r = jax.nn.sigmoid(gx[:, HID:2 * HID] + gh[:, HID:2 * HID])
        # torch.nn.GRUCell: n = tanh(x@Wn + b_in + r*(h@Whn + b_hn)); b_hn is in gh.
        ng = jnp.tanh(gx[:, 2 * HID:GATES] + r * gh[:, 2 * HID:GATES])
        h_new = (1.0 - z) * ng + z * h                                        # [1, HID]

        logits = jnp.dot(h_new.astype(bf16), wout_ref[...],
                         preferred_element_type=f32) + bout_ref[...]          # [1, V]

        # --- token decision on logits (argmax(exp(log_softmax)) == argmax(logits)) ---
        lmax = jnp.max(logits, axis=1, keepdims=True)
        is_max = logits >= jnp.broadcast_to(lmax, logits.shape)
        new_tok = jnp.min(jnp.where(is_max, voc_iota_f, float(VOCAB)),
                          axis=1, keepdims=True).astype(i32)                  # [1, 1]
        new_oh = (voc_iota == jnp.broadcast_to(new_tok, (1, VOCAB)))

        # A-row select for the NEXT step + fused beat lookup (lane GATES of A table)
        a_sel = jnp.dot(new_oh.astype(f32).astype(bf16), a_tbl_ref[...],
                        preferred_element_type=f32)                           # [1, 512]
        arow_new = a_sel[:, 0:GATES]
        beat = a_sel[:, GATES:GATES + 1]
        k_next = k + beat.astype(i32)

        # B-row select at the advanced position for the NEXT step
        k_sel = jnp.clip(k_next, 0, n_pos_pad - 1)
        pos_oh = (pos_iota == jnp.broadcast_to(k_sel, (1, n_pos_pad)))
        brow_new = jnp.dot(pos_oh.astype(f32).astype(bf16), b_tbl_ref[...],
                           preferred_element_type=f32)                        # [1, 3H]

        # --- log_softmax + stores (off the token-decision path) ---
        lse = lmax + jnp.log(jnp.sum(jnp.exp(logits - lmax), axis=1, keepdims=True))
        logp = logits - lse
        logp_ref[pl.ds(i, 1), :] = logp
        tok_ref[pl.ds(i, 1), :] = jnp.broadcast_to(new_tok, (1, VOCAB))       # lane-dense row

        # masked state update: freeze everything once the loop has "stopped"
        cont = jnp.logical_and(new_tok != STOP_TOKEN, k_next <= kmax_v).astype(i32)
        nsteps_n = nsteps + active
        h_n = sel(active, h_new, h)
        k_n = sel(active, k_next, k)
        arow_n = sel(active, arow_new, arow)
        brow_n = sel(active, brow_new, brow)
        active_n = active * cont
        return (h_n, k_n, arow_n, brow_n, active_n, nsteps_n)

    init = (h0_ref[...], k0_ref[...], arow0_ref[...], brow0_ref[...],
            act0_ref[...], jnp.zeros((1, 1), i32))
    h_f, k_f, arow_f, brow_f, act_f, nsteps_f = lax.fori_loop(0, chunk, body, init)

    h_out_ref[...] = h_f
    k_out_ref[...] = k_f
    arow_out_ref[...] = arow_f
    brow_out_ref[...] = brow_f
    act_out_ref[...] = act_f
    nsteps_ref[...] = nsteps_f


@functools.lru_cache(maxsize=None)
def make_decode_fn(n_pos_pad, chunk):
    vmem = pl.BlockSpec(memory_space=pltpu.MemorySpace.VMEM)
    smem = pl.BlockSpec(memory_space=pltpu.MemorySpace.SMEM)
    dec_bytes = ((VOCAB * A_COLS + n_pos_pad * GATES + HID * GATES + HID * VOCAB) * 2
                 + (GATES + VOCAB) * 4
                 + 2 * chunk * VOCAB * 4
                 + (HID + 2 * GATES + 16) * 4 * 4)
    vmem_limit = min(int(dec_bytes * 3 + (8 << 20)), 48 << 20)
    return jax.jit(pl.pallas_call(
        decode_kernel,
        out_shape=(
            jax.ShapeDtypeStruct((chunk, VOCAB), jnp.float32),   # per-step log-probs
            jax.ShapeDtypeStruct((chunk, VOCAB), jnp.int32),     # per-step tokens (broadcast row)
            jax.ShapeDtypeStruct((1, HID), jnp.float32),         # h out
            jax.ShapeDtypeStruct((1, 1), jnp.int32),             # k out
            jax.ShapeDtypeStruct((1, GATES), jnp.float32),       # arow out
            jax.ShapeDtypeStruct((1, GATES), jnp.float32),       # brow out
            jax.ShapeDtypeStruct((1, 1), jnp.int32),             # active out
            jax.ShapeDtypeStruct((1, 1), jnp.int32),             # steps done in this chunk
        ),
        in_specs=[smem] + [vmem] * 11,
        out_specs=(vmem,) * 8,
        compiler_params=pltpu.CompilerParams(vmem_limit_bytes=vmem_limit),
    ))


# ----------------------------- parameter init -------------------------------
def init_params(key):
    ks = jax.random.split(key, 10)
    s = 0.05
    rn = lambda k, shape: jax.random.normal(k, shape, jnp.float32) * s
    wc = rn(ks[0], (CHROMA_FLAT, ENC_C));   bc = jnp.zeros((1, ENC_C), jnp.float32)
    wb = rn(ks[1], (BEAT_NOTE_LEN, ENC_B)); bb = jnp.zeros((1, ENC_B), jnp.float32)
    emb = rn(ks[2], (VOCAB, EMB))
    # Fused GRU weights laid out [z | r | n] along the output dim.
    # NOTE: torch.nn.GRUCell stores (r, z, n); reorder columns when importing real weights.
    wx = jnp.concatenate([rn(ks[3], (XDIM, HID)), rn(ks[4], (XDIM, HID)),
                          rn(ks[5], (XDIM, HID))], axis=1)            # [XDIM, 3H]
    wh = jnp.concatenate([rn(ks[6], (HID, HID)), rn(ks[7], (HID, HID)),
                          rn(ks[8], (HID, HID))], axis=1)             # [HID, 3H]
    bx = jnp.zeros((1, GATES), jnp.float32)
    bh = jnp.zeros((1, GATES), jnp.float32)
    wout = rn(ks[9], (HID, VOCAB)); bout = jnp.zeros((1, VOCAB), jnp.float32)
    return dict(wc=wc, bc=bc, wb=wb, bb=bb, emb=emb, wx=wx, bx=bx, wh=wh, bh=bh,
                wout=wout, bout=bout)


def prepare_model(params, beat_tbl):
    """Precompute bf16 weight tables (done once; ~halves DMA + MXU passes)."""
    bf16 = jnp.bfloat16
    wx = params["wx"]
    wxe = wx[:EMB]                        # rows hit by the token embedding
    wxa_c = wx[EMB:EMB + ENC_C]           # rows hit by the chroma encoding
    wxa_b = wx[EMB + ENC_C:]              # rows hit by the beat-note encoding
    # Token table A: row t = emb[t] @ Wxe + bx, with beat(t) fused in at lane GATES.
    a_core = params["emb"] @ wxe + params["bx"]                       # [VOCAB, 3H]
    beat_col = beat_tbl.reshape(VOCAB, 1).astype(jnp.float32)
    pad = jnp.zeros((VOCAB, A_COLS - GATES - 1), jnp.float32)
    a_tbl = jnp.concatenate([a_core, beat_col, pad], axis=1).astype(bf16)
    return dict(
        wc=params["wc"].astype(bf16), bc=params["bc"],
        wb=params["wb"].astype(bf16), bb=params["bb"],
        wxa_c=wxa_c.astype(bf16), wxa_b=wxa_b.astype(bf16),
        a_tbl=a_tbl,
        wh=params["wh"].astype(bf16), bh=params["bh"],
        wout=params["wout"].astype(bf16), bout=params["bout"],
    )


# ----------------------------- host-side forward ----------------------------
def encoder_decoder_forward(model, chroma, beat_note, last_output,
                            start_t, end_t, beat_interval):
    """Matches Encoder_Decoder.forward: returns (cau_gen, output_concat)."""
    k_max = (end_t - 1000 - start_t) // beat_interval
    if k_max < 0:                          # while-loop condition fails immediately
        return [], []
    n_pos = k_max + 1
    n_pos_pad = _ceil_mult(n_pos, ENC_TILE)

    # t only takes values start_t + k*beat_interval -> gather all candidate windows once.
    # TODO(synk): for very long horizons, gather the overlapping windows in-kernel
    # from raw chroma/beat_note (pl.ANY + manual DMA) instead of materializing them.
    ts = start_t + beat_interval * jnp.arange(n_pos)
    c_idx = ts[:, None] + jnp.arange(CHROMA_LEN)[None, :]
    cw = jnp.transpose(chroma[:, c_idx], (1, 0, 2)).reshape(n_pos, CHROMA_FLAT)
    b_idx = ts[:, None] + jnp.arange(BEAT_NOTE_LEN)[None, :]
    bw = beat_note[b_idx]
    cw = jnp.pad(cw, ((0, n_pos_pad - n_pos), (0, 0))).astype(jnp.bfloat16)
    bw = jnp.pad(bw, ((0, n_pos_pad - n_pos), (0, 0))).astype(jnp.bfloat16)

    # Encoder pass: B table = acoustic @ Wxa for every candidate position.
    encode = make_encode_fn(n_pos_pad)
    b_tbl = encode(cw, bw, model["wc"], model["bc"], model["wb"], model["bb"],
                   model["wxa_c"], model["wxa_b"])

    # Initial decoder state.
    tok0 = int(last_output)
    a_tbl = model["a_tbl"]
    h = jnp.zeros((1, HID), jnp.float32)
    k = jnp.zeros((1, 1), jnp.int32)
    arow = a_tbl[tok0:tok0 + 1, :GATES].astype(jnp.float32)
    brow = b_tbl[0:1, :].astype(jnp.float32)
    act = jnp.ones((1, 1), jnp.int32)
    kmax_arr = jnp.array([k_max], jnp.int32)

    # beat >= 1 for every token of the stand-in table, so total steps <= n_pos.
    max_total = n_pos
    remaining = max_total
    chunk = min(32, _ceil_mult(max_total, 8))
    logp_rows, cau_gen = [], []

    while remaining > 0:
        decode = make_decode_fn(n_pos_pad, chunk)
        outs = decode(kmax_arr, a_tbl, b_tbl, model["wh"], model["bh"],
                      model["wout"], model["bout"], h, k, arow, brow, act)
        jax.block_until_ready(outs)
        logp_c, tok_c, h, k, arow, brow, act, nst = outs
        n = int(np.asarray(nst)[0, 0])     # one host sync per chunk (not per step)
        if n > 0:
            block = np.asarray(logp_c)[:n]
            logp_rows.extend(block[i:i + 1] for i in range(n))
            cau_gen.extend(int(t) for t in np.asarray(tok_c)[:n, 0])
        remaining -= n
        if int(np.asarray(act)[0, 0]) == 0:   # stop token fired or t + 1000 > end_t
            break
        chunk = min(chunk * 2, 512, _ceil_mult(max_total, 8))

    output_concat = [np.exp(r) for r in logp_rows]     # np.exp(output), shape (1, VOCAB)
    return cau_gen, output_concat


# ----------------------------- main ------------------------------------------
if __name__ == "__main__":
    key = jax.random.PRNGKey(0)
    k_param, k_chroma, k_beat = jax.random.split(key, 3)

    params = init_params(k_param)
    # TODO(synk): real get_beat_of_cau looks up cau_file / cau_idx_to_name;
    # deterministic (id % 4) + 1 stand-in table, fused into the token table.
    beat_tbl = ((jnp.arange(VOCAB) % 4) + 1).astype(jnp.float32)
    model = prepare_model(params, beat_tbl)

    T_TOTAL = 4200
    chroma = jax.random.uniform(k_chroma, (CHROMA_BINS, T_TOTAL), jnp.float32)
    beat_note = jax.random.uniform(k_beat, (T_TOTAL,), jnp.float32)

    cau_gen, output_concat = encoder_decoder_forward(
        model, chroma, beat_note,
        last_output=42, start_t=0, end_t=3000, beat_interval=250)

    assert len(cau_gen) == len(output_concat)
    assert len(cau_gen) >= 1
    for p in output_concat:
        assert p.shape == (1, VOCAB)
        # each exp(log_softmax) row sums to 1
        assert abs(float(p.sum()) - 1.0) < 1e-3
    # stop token, if generated, must be the last element (loop stops right after)
    if STOP_TOKEN in cau_gen:
        assert cau_gen.index(STOP_TOKEN) == len(cau_gen) - 1

    print("KERNEL_OK")
</pallas_src>

<mosaic_0001>
module attributes {stable_mosaic.version = 11 : i64} {
  func.func @encode_kernel(%arg0: i32, %arg1: memref<16x2400xbf16, #tpu.memory_space<vmem>>, %arg2: memref<16x2000xbf16, #tpu.memory_space<vmem>>, %arg3: memref<2400x128xbf16, #tpu.memory_space<vmem>>, %arg4: memref<1x128xf32, #tpu.memory_space<vmem>>, %arg5: memref<2000x128xbf16, #tpu.memory_space<vmem>>, %arg6: memref<1x128xf32, #tpu.memory_space<vmem>>, %arg7: memref<128x384xbf16, #tpu.memory_space<vmem>>, %arg8: memref<128x384xbf16, #tpu.memory_space<vmem>>, %arg9: memref<16x384xbf16, #tpu.memory_space<vmem>>) attributes {dimension_semantics = [#tpu.dimension_semantics<parallel>], iteration_bounds = array<i64: 1>, scalar_prefetch = 0 : i64, scratch_operands = 0 : i64, tpu.core_type = #tpu.core_type<tc>, window_params = [{transform_indices = @transform_0, window_bounds = array<i64: 16, 2400>}, {transform_indices = @transform_1, window_bounds = array<i64: 16, 2000>}, {pipeline_mode = #tpu.pipeline_mode<synchronous>, transform_indices = @transform_2, window_bounds = array<i64: 2400, 128>}, {pipeline_mode = #tpu.pipeline_mode<synchronous>, transform_indices = @transform_3, window_bounds = array<i64: 1, 128>}, {pipeline_mode = #tpu.pipeline_mode<synchronous>, transform_indices = @transform_4, window_bounds = array<i64: 2000, 128>}, {pipeline_mode = #tpu.pipeline_mode<synchronous>, transform_indices = @transform_5, window_bounds = array<i64: 1, 128>}, {pipeline_mode = #tpu.pipeline_mode<synchronous>, transform_indices = @transform_6, window_bounds = array<i64: 128, 384>}, {pipeline_mode = #tpu.pipeline_mode<synchronous>, transform_indices = @transform_7, window_bounds = array<i64: 128, 384>}, {transform_indices = @transform_8, window_bounds = array<i64: 16, 384>}]} {
    %c0 = arith.constant 0 : index
    %c0_0 = arith.constant 0 : index
    %0 = vector.load %arg1[%c0, %c0_0] : memref<16x2400xbf16, #tpu.memory_space<vmem>>, vector<16x2400xbf16>
    %c0_1 = arith.constant 0 : index
    %c0_2 = arith.constant 0 : index
    %1 = vector.load %arg3[%c0_1, %c0_2] : memref<2400x128xbf16, #tpu.memory_space<vmem>>, vector<2400x128xbf16>
    %cst = arith.constant dense<0.000000e+00> : vector<16x128xf32>
    %2 = tpu.matmul %0, %1, %cst {dimension_numbers = #tpu.dot_dimension_numbers<[1], [0], [0], [1], [0, 0, 1, 1], [], []>} : vector<16x2400xbf16>, vector<2400x128xbf16>, vector<16x128xf32> -> vector<16x128xf32>
    %c0_3 = arith.constant 0 : index
    %c0_4 = arith.constant 0 : index
    %3 = vector.load %arg4[%c0_3, %c0_4] : memref<1x128xf32, #tpu.memory_space<vmem>>, vector<1x128xf32>
    %4 = vector.broadcast %3 : vector<1x128xf32> to vector<16x128xf32>
    %5 = arith.addf %2, %4 : vector<16x128xf32>
    %cst_5 = arith.constant 0.000000e+00 : f32
    %6 = vector.broadcast %cst_5 : f32 to vector<16x128xf32>
    %7 = arith.maximumf %5, %6 : vector<16x128xf32>
    %c0_6 = arith.constant 0 : index
    %c0_7 = arith.constant 0 : index
    %8 = vector.load %arg2[%c0_6, %c0_7] : memref<16x2000xbf16, #tpu.memory_space<vmem>>, vector<16x2000xbf16>
    %c0_8 = arith.constant 0 : index
    %c0_9 = arith.constant 0 : index
    %9 = vector.load %arg5[%c0_8, %c0_9] : memref<2000x128xbf16, #tpu.memory_space<vmem>>, vector<2000x128xbf16>
    %cst_10 = arith.constant dense<0.000000e+00> : vector<16x128xf32>
    %10 = tpu.matmul %8, %9, %cst_10 {dimension_numbers = #tpu.dot_dimension_numbers<[1], [0], [0], [1], [0, 0, 1, 1], [], []>} : vector<16x2000xbf16>, vector<2000x128xbf16>, vector<16x128xf32> -> vector<16x128xf32>
    %c0_11 = arith.constant 0 : index
    %c0_12 = arith.constant 0 : index
    %11 = vector.load %arg6[%c0_11, %c0_12] : memref<1x128xf32, #tpu.memory_space<vmem>>, vector<1x128xf32>
    %12 = vector.broadcast %11 : vector<1x128xf32> to vector<16x128xf32>
    %13 = arith.addf %10, %12 : vector<16x128xf32>
    %cst_13 = arith.constant 0.000000e+00 : f32
    %14 = vector.broadcast %cst_13 : f32 to vector<16x128xf32>
    %15 = arith.maximumf %13, %14 : vector<16x128xf32>
    %16 = arith.truncf %7 : vector<16x128xf32> to vector<16x128xbf16>
    %c0_14 = arith.constant 0 : index
    %c0_15 = arith.constant 0 : index
    %17 = vector.load %arg7[%c0_14, %c0_15] : memref<128x384xbf16, #tpu.memory_space<vmem>>, vector<128x384xbf16>
    %cst_16 = arith.constant dense<0.000000e+00> : vector<16x384xf32>
    %18 = tpu.matmul %16, %17, %cst_16 {dimension_numbers = #tpu.dot_dimension_numbers<[1], [0], [0], [1], [0, 0, 1, 1], [], []>} : vector<16x128xbf16>, vector<128x384xbf16>, vector<16x384xf32> -> vector<16x384xf32>
    %19 = arith.truncf %15 : vector<16x128xf32> to vector<16x128xbf16>
    %c0_17 = arith.constant 0 : index
    %c0_18 = arith.constant 0 : index
    %20 = vector.load %arg8[%c0_17, %c0_18] : memref<128x384xbf16, #tpu.memory_space<vmem>>, vector<128x384xbf16>
    %cst_19 = arith.constant dense<0.000000e+00> : vector<16x384xf32>
    %21 = tpu.matmul %19, %20, %cst_19 {dimension_numbers = #tpu.dot_dimension_numbers<[1], [0], [0], [1], [0, 0, 1, 1], [], []>} : vector<16x128xbf16>, vector<128x384xbf16>, vector<16x384xf32> -> vector<16x384xf32>
    %22 = arith.addf %18, %21 : vector<16x384xf32>
    %23 = arith.truncf %22 : vector<16x384xf32> to vector<16x384xbf16>
    %c0_20 = arith.constant 0 : index
    %c0_21 = arith.constant 0 : index
    %24 = vector.load %arg9[%c0_20, %c0_21] : memref<16x384xbf16, #tpu.memory_space<vmem>>, vector<16x384xbf16>
    tpu.vector_store %arg9[%c0_20, %c0_21], %23 {strides = array<i32>} : memref<16x384xbf16, #tpu.memory_space<vmem>>, vector<16x384xbf16>,
    return
  }
  func.func @transform_0(%arg0: i32) -> (i32, i32) {
    %c0_i32 = arith.constant 0 : i32
    %c0_i32_0 = arith.constant 0 : i32
    return %arg0, %c0_i32 : i32, i32
  }
  func.func @transform_1(%arg0: i32) -> (i32, i32) {
    %c0_i32 = arith.constant 0 : i32
    %c0_i32_0 = arith.constant 0 : i32
    return %arg0, %c0_i32 : i32, i32
  }
  func.func @transform_2(%arg0: i32) -> (i32, i32) {
    %c0_i32 = arith.constant 0 : i32
    %c0_i32_0 = arith.constant 0 : i32
    %c0_i32_1 = arith.constant 0 : i32
    return %c0_i32, %c0_i32_0 : i32, i32
  }
  func.func @transform_3(%arg0: i32) -> (i32, i32) {
    %c0_i32 = arith.constant 0 : i32
    %c0_i32_0 = arith.constant 0 : i32
    %c0_i32_1 = arith.constant 0 : i32
    return %c0_i32, %c0_i32_0 : i32, i32
  }
  func.func @transform_4(%arg0: i32) -> (i32, i32) {
    %c0_i32 = arith.constant 0 : i32
    %c0_i32_0 = arith.constant 0 : i32
    %c0_i32_1 = arith.constant 0 : i32
    return %c0_i32, %c0_i32_0 : i32, i32
  }
  func.func @transform_5(%arg0: i32) -> (i32, i32) {
    %c0_i32 = arith.constant 0 : i32
    %c0_i32_0 = arith.constant 0 : i32
    %c0_i32_1 = arith.constant 0 : i32
    return %c0_i32, %c0_i32_0 : i32, i32
  }
  func.func @transform_6(%arg0: i32) -> (i32, i32) {
    %c0_i32 = arith.constant 0 : i32
    %c0_i32_0 = arith.constant 0 : i32
    %c0_i32_1 = arith.constant 0 : i32
    return %c0_i32, %c0_i32_0 : i32, i32
  }
  func.func @transform_7(%arg0: i32) -> (i32, i32) {
    %c0_i32 = arith.constant 0 : i32
    %c0_i32_0 = arith.constant 0 : i32
    %c0_i32_1 = arith.constant 0 : i32
    return %c0_i32, %c0_i32_0 : i32, i32
  }
  func.func @transform_8(%arg0: i32) -> (i32, i32) {
    %c0_i32 = arith.constant 0 : i32
    %c0_i32_0 = arith.constant 0 : i32
    return %arg0, %c0_i32 : i32, i32
  }
}

</mosaic_0001>

<llo_original>
// kernel: tpu_custom_call.1
$region0: #{tpu_custom_call.1}
  #allocation0 [shape = 'u32[]', space=smem, size = 0x4, offset = 0x4, fixed_abs, tag = 'smem constant byte address 0x4 - core index']
  #allocation1 [shape = 'u32[72,128]{1,0:T(1,128)}', space=vmem, size = 0x9000, scoped, tag = 'internal scratch']
  %s0 = inlined_call_operand.hbm [shape: bf16[16,2400], index: 0, kind: input, shape index: {}]
  %s1 = inlined_call_operand.hbm [shape: bf16[16,2000], index: 1, kind: input, shape index: {}]
  %s2 = inlined_call_operand.hbm [shape: bf16[2400,128], index: 2, kind: input, shape index: {}]
  %s3 = inlined_call_operand.vmem [shape: f32[1,128], index: 3, kind: input, shape index: {}]
  %s4 = inlined_call_operand.hbm [shape: bf16[2000,128], index: 4, kind: input, shape index: {}]
  %s5 = inlined_call_operand.vmem [shape: f32[1,128], index: 5, kind: input, shape index: {}]
  %s6 = inlined_call_operand.hbm [shape: bf16[128,384], index: 6, kind: input, shape index: {}]
  %s7 = inlined_call_operand.hbm [shape: bf16[128,384], index: 7, kind: input, shape index: {}]
  %s8 = inlined_call_operand.hbm [shape: bf16[16,384], index: 8, kind: output, shape index: {}]
  %s9 = sld [smem:[#allocation0]]
  $region66: #{tpu_custom_call.1} parent=0
    _
  %s11 = ssub.s32 1, %s9
  %s12 = scalar_select 0, %s11, %s9
  $region1: #{tpu_custom_call.1} parent=0
    #allocation2 [shape = 'u8[77824]{0}', space=vmem, size = 0x13000, scoped, tag = 'input window, operand 0, single buffered']
    #allocation3 [shape = 's32[1]{0}', space=sflag, size = 0x4, scoped, tag = 'scoped memory for tpu_custom_call.1']
    #allocation4 [shape = 's32[1]{0}', space=sflag, size = 0x4, scoped, tag = 'scoped memory for tpu_custom_call.1']
    #allocation5 [shape = 'u8[65536]{0}', space=vmem, size = 0x10000, scoped, tag = 'input window, operand 1, single buffered']
    #allocation6 [shape = 's32[1]{0}', space=sflag, size = 0x4, scoped, tag = 'scoped memory for tpu_custom_call.1']
    #allocation7 [shape = 'u8[614400]{0}', space=vmem, size = 0x96000, scoped, tag = 'input window, operand 2, single buffered']
    #allocation8 [shape = 'u8[512000]{0}', space=vmem, size = 0x7d000, scoped, tag = 'input window, operand 4, single buffered']
    #allocation9 [shape = 's32[1]{0}', space=sflag, size = 0x4, scoped, tag = 'scoped memory for tpu_custom_call.1']
    #allocation10 [shape = 'u8[98304]{0}', space=vmem, size = 0x18000, scoped, tag = 'input window, operand 6, single buffered']
    #allocation11 [shape = 'u8[98304]{0}', space=vmem, size = 0x18000, scoped, tag = 'input window, operand 7, single buffered']
    #allocation12 [shape = 's32[1]{0}', space=sflag, size = 0x4, scoped, tag = 'scoped memory for tpu_custom_call.1']
    #allocation13 [shape = 'u8[12288]{0}', space=vmem, size = 0x3000, scoped, tag = 'output window, operand 0, single buffered']
    %13 = vsyncpa [#allocation3], 0
    %14 = vsyncpa [#allocation6], 0
    %15 = vsyncpa [#allocation9], 0
    %16 = vsyncpa [#allocation12], 0
    %17 = vsyncpa [#allocation4], 0
    // Predicated region
    $region2: #{tpu_custom_call.1} parent=1 // pred_check
      _
    $region3: #{tpu_custom_call.1} parent=1 // pred_check_branch
      %19 = sbr.rel (0) target = $region5
    $region4: #{tpu_custom_call.1} parent=1 // pred_region
      %21 = vsyncadd [#allocation3], 0
      %s22 = sshll.u32 %s0, 4
      %s23 = int_to_ptr.hbm [resolvable:$true] %s22
      %s24 = sshll.u32 [#allocation2], 4
      %s25 = int_to_ptr.vmem [resolvable:$true] %s24
      %30 = dma.hbm_to_vmem [thread:$0]  %s23, 2432, %s25, [#allocation3], 1216, 1216, 76
    $region5: #{tpu_custom_call.1} parent=1 // pred_fallthru
      _
    // Predicated region
    $region6: #{tpu_custom_call.1} parent=1 // pred_check
      _
    $region7: #{tpu_custom_call.1} parent=1 // pred_check_branch
      %32 = sbr.rel (0) target = $region9
    $region8: #{tpu_custom_call.1} parent=1 // pred_region
      %34 = vsyncadd [#allocation6], 0
      %s35 = sshll.u32 %s1, 4
      %s36 = int_to_ptr.hbm [resolvable:$true] %s35
      %s37 = sshll.u32 [#allocation5], 4
      %s38 = int_to_ptr.vmem [resolvable:$true] %s37
      %43 = dma.hbm_to_vmem [thread:$0]  %s36, 2048, %s38, [#allocation6], 1024, 1024, 64
    $region9: #{tpu_custom_call.1} parent=1 // pred_fallthru
      _
    // Predicated region
    $region10: #{tpu_custom_call.1} parent=1 // pred_check
      _
    $region11: #{tpu_custom_call.1} parent=1 // pred_check_branch
      %45 = sbr.rel (0) target = $region13
    $region12: #{tpu_custom_call.1} parent=1 // pred_region
      %47 = vsyncadd [#allocation6], 0
      %s48 = sshll.u32 %s2, 4
      %s49 = int_to_ptr.hbm [resolvable:$true] %s48
      %s50 = sshll.u32 [#allocation7], 4
      %s51 = int_to_ptr.vmem [resolvable:$true] %s50
      %56 = dma.hbm_to_vmem [thread:$0]  %s49, 19200, %s51, [#allocation6], 64, 64, 4
    $region13: #{tpu_custom_call.1} parent=1 // pred_fallthru
      _
    // Predicated region
    $region14: #{tpu_custom_call.1} parent=1 // pred_check
      _
    $region15: #{tpu_custom_call.1} parent=1 // pred_check_branch
      %58 = sbr.rel (0) target = $region17
    $region16: #{tpu_custom_call.1} parent=1 // pred_region
      _
    $region17: #{tpu_custom_call.1} parent=1 // pred_fallthru
      _
    // Predicated region
    $region18: #{tpu_custom_call.1} parent=1 // pred_check
      _
    $region19: #{tpu_custom_call.1} parent=1 // pred_check_branch
      %60 = sbr.rel (0) target = $region21
    $region20: #{tpu_custom_call.1} parent=1 // pred_region
      %62 = vsyncadd [#allocation9], 0
      %s63 = sshll.u32 %s4, 4
      %s64 = int_to_ptr.hbm [resolvable:$true] %s63
      %s65 = sshll.u32 [#allocation8], 4
      %s66 = int_to_ptr.vmem [resolvable:$true] %s65
      %71 = dma.hbm_to_vmem [thread:$0]  %s64, 16000, %s66, [#allocation9], 64, 64, 4
    $region21: #{tpu_custom_call.1} parent=1 // pred_fallthru
      _
    // Predicated region
    $region22: #{tpu_custom_call.1} parent=1 // pred_check
      _
    $region23: #{tpu_custom_call.1} parent=1 // pred_check_branch
      %73 = sbr.rel (0) target = $region25
    $region24: #{tpu_custom_call.1} parent=1 // pred_region
      _
    $region25: #{tpu_custom_call.1} parent=1 // pred_fallthru
      _
    // Predicated region
    $region26: #{tpu_custom_call.1} parent=1 // pred_check
      _
    $region27: #{tpu_custom_call.1} parent=1 // pred_check_branch
      %75 = sbr.rel (0) target = $region29
    $region28: #{tpu_custom_call.1} parent=1 // pred_region
      %77 = vsyncadd [#allocation9], 0
      %s78 = sshll.u32 %s6, 4
      %s79 = int_to_ptr.hbm [resolvable:$true] %s78
      %s80 = sshll.u32 [#allocation10], 4
      %s81 = int_to_ptr.vmem [resolvable:$true] %s80
      %86 = dma.hbm_to_vmem [thread:$0]  %s79, 3072, %s81, [#allocation9], 192, 192, 12
    $region29: #{tpu_custom_call.1} parent=1 // pred_fallthru
      _
    // Predicated region
    $region30: #{tpu_custom_call.1} parent=1 // pred_check
      _
    $region31: #{tpu_custom_call.1} parent=1 // pred_check_branch
      %88 = sbr.rel (0) target = $region33
    $region32: #{tpu_custom_call.1} parent=1 // pred_region
      %90 = vsyncadd [#allocation12], 0
      %s91 = sshll.u32 %s7, 4
      %s92 = int_to_ptr.hbm [resolvable:$true] %s91
      %s93 = sshll.u32 [#allocation11], 4
      %s94 = int_to_ptr.vmem [resolvable:$true] %s93
      %99 = dma.hbm_to_vmem [thread:$0]  %s92, 3072, %s94, [#allocation12], 192, 192, 12
    $region33: #{tpu_custom_call.1} parent=1 // pred_fallthru
      _
    // Predicated region
    $region34: #{tpu_custom_call.1} parent=1 // pred_check
      _
    $region35: #{tpu_custom_call.1} parent=1 // pred_check_branch
      %101 = sbr.rel (0) target = $region37
    $region36: #{tpu_custom_call.1} parent=1 // pred_region
      %103 = dma.done [#allocation3], 2432
    $region37: #{tpu_custom_call.1} parent=1 // pred_fallthru
      _
    // Predicated region
    $region38: #{tpu_custom_call.1} parent=1 // pred_check
      _
    $region39: #{tpu_custom_call.1} parent=1 // pred_check_branch
      %105 = sbr.rel (0) target = $region41
    $region40: #{tpu_custom_call.1} parent=1 // pred_region
      %107 = dma.done [#allocation6], 2048
    $region41: #{tpu_custom_call.1} parent=1 // pred_fallthru
      _
    // Predicated region
    $region42: #{tpu_custom_call.1} parent=1 // pred_check
      _
    $region43: #{tpu_custom_call.1} parent=1 // pred_check_branch
      %109 = sbr.rel (0) target = $region45
    $region44: #{tpu_custom_call.1} parent=1 // pred_region
      %111 = dma.done [#allocation6], 19200
    $region45: #{tpu_custom_call.1} parent=1 // pred_fallthru
      _
    // Predicated region
    $region46: #{tpu_custom_call.1} parent=1 // pred_check
      _
    $region47: #{tpu_custom_call.1} parent=1 // pred_check_branch
      %113 = sbr.rel (0) target = $region49
    $region48: #{tpu_custom_call.1} parent=1 // pred_region
      %115 = dma.done [#allocation9], 16000
    $region49: #{tpu_custom_call.1} parent=1 // pred_fallthru
      _
    // Predicated region
    $region50: #{tpu_custom_call.1} parent=1 // pred_check
      _
    $region51: #{tpu_custom_call.1} parent=1 // pred_check_branch
      %117 = sbr.rel (0) target = $region53
    $region52: #{tpu_custom_call.1} parent=1 // pred_region
      %119 = dma.done [#allocation9], 3072
    $region53: #{tpu_custom_call.1} parent=1 // pred_fallthru
      _
    // Predicated region
    $region54: #{tpu_custom_call.1} parent=1 // pred_check
      _
    $region55: #{tpu_custom_call.1} parent=1 // pred_check_branch
      %121 = sbr.rel (0) target = $region57
    $region56: #{tpu_custom_call.1} parent=1 // pred_region
      %123 = dma.done [#allocation12], 3072
    $region57: #{tpu_custom_call.1} parent=1 // pred_fallthru
      _
    %v125 = vld [vmem:[#allocation2] sm:$0xff]
    %v126 = vld [vmem:[#allocation2 + $0x8] sm:$0xff]
    %v127 = vld [vmem:[#allocation2 + $0x10] sm:$0xff]
    %v128 = vld [vmem:[#allocation2 + $0x18] sm:$0xff]
    %v129 = vld [vmem:[#allocation2 + $0x20] sm:$0xff]
    %v130 = vld [vmem:[#allocation2 + $0x28] sm:$0xff]
    %v131 = vld [vmem:[#allocation2 + $0x30] sm:$0xff]
    %v132 = vld [vmem:[#allocation2 + $0x38] sm:$0xff]
    %v133 = vld [vmem:[#allocation2 + $0x40] sm:$0xff]
    %v134 = vld [vmem:[#allocation2 + $0x48] sm:$0xf]
    %v135 = vld [vmem:[#allocation2 + $0x4c] sm:$0xff]
    %v136 = vld [vmem:[#allocation2 + $0x54] sm:$0xff]
    %v137 = vld [vmem:[#allocation2 + $0x5c] sm:$0xff]
    %v138 = vld [vmem:[#allocation2 + $0x64] sm:$0xff]
    %v139 = vld [vmem:[#allocation2 + $0x6c] sm:$0xff]
    %v140 = vld [vmem:[#allocation2 + $0x74] sm:$0xff]
    %v141 = vld [vmem:[#allocation2 + $0x7c] sm:$0xff]
    %v142 = vld [vmem:[#allocation2 + $0x84] sm:$0xff]
    %v143 = vld [vmem:[#allocation2 + $0x8c] sm:$0xff]
    %v144 = vld [vmem:[#allocation2 + $0x94] sm:$0xf]
    %v145 = vld [vmem:[#allocation7] sm:$0xf]
    %v146 = vld [vmem:[#allocation7 + $0x4] sm:$0xf]
    %v147 = vld [vmem:[#allocation7 + $0x8] sm:$0xf]
    %v148 = vld [vmem:[#allocation7 + $0xc] sm:$0xf]
    %v149 = vld [vmem:[#allocation7 + $0x10] sm:$0xf]
    %v150 = vld [vmem:[#allocation7 + $0x14] sm:$0xf]
    %v151 = vld [vmem:[#allocation7 + $0x18] sm:$0xf]
    %v152 = vld [vmem:[#allocation7 + $0x1c] sm:$0xf]
    %v153 = vld [vmem:[#allocation7 + $0x20] sm:$0xf]
    %v154 = vld [vmem:[#allocation7 + $0x24] sm:$0xf]
    %v155 = vld [vmem:[#allocation7 + $0x28] sm:$0xf]
    %v156 = vld [vmem:[#allocation7 + $0x2c] sm:$0xf]
    %v157 = vld [vmem:[#allocation7 + $0x30] sm:$0xf]
    %v158 = vld [vmem:[#allocation7 + $0x34] sm:$0xf]
    %v159 = vld [vmem:[#allocation7 + $0x38] sm:$0xf]
    %v160 = vld [vmem:[#allocation7 + $0x3c] sm:$0xf]
    %v161 = vld [vmem:[#allocation7 + $0x40] sm:$0xf]
    %v162 = vld [vmem:[#allocation7 + $0x44] sm:$0xf]
    %v163 = vld [vmem:[#allocation7 + $0x48] sm:$0xf]
    %v164 = vld [vmem:[#allocation7 + $0x4c] sm:$0xf]
    %v165 = vld [vmem:[#allocation7 + $0x50] sm:$0xf]
    %v166 = vld [vmem:[#allocation7 + $0x54] sm:$0xf]
    %v167 = vld [vmem:[#allocation7 + $0x58] sm:$0xf]
    %v168 = vld [vmem:[#allocation7 + $0x5c] sm:$0xf]
    %v169 = vld [vmem:[#allocation7 + $0x60] sm:$0xf]
    %v170 = vld [vmem:[#allocation7 + $0x64] sm:$0xf]
    %v171 = vld [vmem:[#allocation7 + $0x68] sm:$0xf]
    %v172 = vld [vmem:[#allocation7 + $0x6c] sm:$0xf]
    %v173 = vld [vmem:[#allocation7 + $0x70] sm:$0xf]
    %v174 = vld [vmem:[#allocation7 + $0x74] sm:$0xf]
    %v175 = vld [vmem:[#allocation7 + $0x78] sm:$0xf]
    %v176 = vld [vmem:[#allocation7 + $0x7c] sm:$0xf]
    %v177 = vld [vmem:[#allocation7 + $0x80] sm:$0xf]
    %v178 = vld [vmem:[#allocation7 + $0x84] sm:$0xf]
    %v179 = vld [vmem:[#allocation7 + $0x88] sm:$0xf]
    %v180 = vld [vmem:[#allocation7 + $0x8c] sm:$0xf]
    %v181 = vld [vmem:[#allocation7 + $0x90] sm:$0xf]
    %v182 = vld [vmem:[#allocation7 + $0x94] sm:$0xf]
    %v183 = vld [vmem:[#allocation7 + $0x98] sm:$0xf]
    %v184 = vld [vmem:[#allocation7 + $0x9c] sm:$0xf]
    %v185 = vld [vmem:[#allocation7 + $0xa0] sm:$0xf]
    %v186 = vld [vmem:[#allocation7 + $0xa4] sm:$0xf]
    %v187 = vld [vmem:[#allocation7 + $0xa8] sm:$0xf]
    %v188 = vld [vmem:[#allocation7 + $0xac] sm:$0xf]
    %v189 = vld [vmem:[#allocation7 + $0xb0] sm:$0xf]
    %v190 = vld [vmem:[#allocation7 + $0xb4] sm:$0xf]
    %v191 = vld [vmem:[#allocation7 + $0xb8] sm:$0xf]
    %v192 = vld [vmem:[#allocation7 + $0xbc] sm:$0xf]
    %v193 = vld [vmem:[#allocation7 + $0xc0] sm:$0xf]
    %v194 = vld [vmem:[#allocation7 + $0xc4] sm:$0xf]
    %v195 = vld [vmem:[#allocation7 + $0xc8] sm:$0xf]
    %v196 = vld [vmem:[#allocation7 + $0xcc] sm:$0xf]
    %v197 = vld [vmem:[#allocation7 + $0xd0] sm:$0xf]
    %v198 = vld [vmem:[#allocation7 + $0xd4] sm:$0xf]
    %v199 = vld [vmem:[#allocation7 + $0xd8] sm:$0xf]
    %v200 = vld [vmem:[#allocation7 + $0xdc] sm:$0xf]
    %v201 = vld [vmem:[#allocation7 + $0xe0] sm:$0xf]
    %v202 = vld [vmem:[#allocation7 + $0xe4] sm:$0xf]
    %v203 = vld [vmem:[#allocation7 + $0xe8] sm:$0xf]
    %v204 = vld [vmem:[#allocation7 + $0xec] sm:$0xf]
    %v205 = vld [vmem:[#allocation7 + $0xf0] sm:$0xf]
    %v206 = vld [vmem:[#allocation7 + $0xf4] sm:$0xf]
    %v207 = vld [vmem:[#allocation7 + $0xf8] sm:$0xf]
    %v208 = vld [vmem:[#allocation7 + $0xfc] sm:$0xf]
    %v209 = vld [vmem:[#allocation7 + $0x100] sm:$0xf]
    %v210 = vld [vmem:[#allocation7 + $0x104] sm:$0xf]
    %v211 = vld [vmem:[#allocation7 + $0x108] sm:$0xf]
    %v212 = vld [vmem:[#allocation7 + $0x10c] sm:$0xf]
    %v213 = vld [vmem:[#allocation7 + $0x110] sm:$0xf]
    %v214 = vld [vmem:[#allocation7 + $0x114] sm:$0xf]
    %v215 = vld [vmem:[#allocation7 + $0x118] sm:$0xf]
    %v216 = vld [vmem:[#allocation7 + $0x11c] sm:$0xf]
    %v217 = vld [vmem:[#allocation7 + $0x120] sm:$0xf]
    %v218 = vld [vmem:[#allocation7 + $0x124] sm:$0xf]
    %v219 = vld [vmem:[#allocation7 + $0x128] sm:$0xf]
    %v220 = vld [vmem:[#allocation7 + $0x12c] sm:$0xf]
    %v221 = vld [vmem:[#allocation7 + $0x130] sm:$0xf]
    %v222 = vld [vmem:[#allocation7 + $0x134] sm:$0xf]
    %v223 = vld [vmem:[#allocation7 + $0x138] sm:$0xf]
    %v224 = vld [vmem:[#allocation7 + $0x13c] sm:$0xf]
    %v225 = vld [vmem:[#allocation7 + $0x140] sm:$0xf]
    %v226 = vld [vmem:[#allocation7 + $0x144] sm:$0xf]
    %v227 = vld [vmem:[#allocation7 + $0x148] sm:$0xf]
    %v228 = vld [vmem:[#allocation7 + $0x14c] sm:$0xf]
    %v229 = vld [vmem:[#allocation7 + $0x150] sm:$0xf]
    %v230 = vld [vmem:[#allocation7 + $0x154] sm:$0xf]
    %v231 = vld [vmem:[#allocation7 + $0x158] sm:$0xf]
    %v232 = vld [vmem:[#allocation7 + $0x15c] sm:$0xf]
    %v233 = vld [vmem:[#allocation7 + $0x160] sm:$0xf]
    %v234 = vld [vmem:[#allocation7 + $0x164] sm:$0xf]
    %v235 = vld [vmem:[#allocation7 + $0x168] sm:$0xf]
    %v236 = vld [vmem:[#allocation7 + $0x16c] sm:$0xf]
    %v237 = vld [vmem:[#allocation7 + $0x170] sm:$0xf]
    %v238 = vld [vmem:[#allocation7 + $0x174] sm:$0xf]
    %v239 = vld [vmem:[#allocation7 + $0x178] sm:$0xf]
    %v240 = vld [vmem:[#allocation7 + $0x17c] sm:$0xf]
    %v241 = vld [vmem:[#allocation7 + $0x180] sm:$0xf]
    %v242 = vld [vmem:[#allocation7 + $0x184] sm:$0xf]
    %v243 = vld [vmem:[#allocation7 + $0x188] sm:$0xf]
    %v244 = vld [vmem:[#allocation7 + $0x18c] sm:$0xf]
    %v245 = vld [vmem:[#allocation7 + $0x190] sm:$0xf]
    %v246 = vld [vmem:[#allocation7 + $0x194] sm:$0xf]
    %v247 = vld [vmem:[#allocation7 + $0x198] sm:$0xf]
    %v248 = vld [vmem:[#allocation7 + $0x19c] sm:$0xf]
    %v249 = vld [vmem:[#allocation7 + $0x1a0] sm:$0xf]
    %v250 = vld [vmem:[#allocation7 + $0x1a4] sm:$0xf]
    %v251 = vld [vmem:[#allocation7 + $0x1a8] sm:$0xf]
    %v252 = vld [vmem:[#allocation7 + $0x1ac] sm:$0xf]
    %v253 = vld [vmem:[#allocation7 + $0x1b0] sm:$0xf]
    %v254 = vld [vmem:[#allocation7 + $0x1b4] sm:$0xf]
    %v255 = vld [vmem:[#allocation7 + $0x1b8] sm:$0xf]
    %v256 = vld [vmem:[#allocation7 + $0x1bc] sm:$0xf]
    %v257 = vld [vmem:[#allocation7 + $0x1c0] sm:$0xf]
    %v258 = vld [vmem:[#allocation7 + $0x1c4] sm:$0xf]
    %v259 = vld [vmem:[#allocation7 + $0x1c8] sm:$0xf]
    %v260 = vld [vmem:[#allocation7 + $0x1cc] sm:$0xf]
    %v261 = vld [vmem:[#allocation7 + $0x1d0] sm:$0xf]
    %v262 = vld [vmem:[#allocation7 + $0x1d4] sm:$0xf]
    %v263 = vld [vmem:[#allocation7 + $0x1d8] sm:$0xf]
    %v264 = vld [vmem:[#allocation7 + $0x1dc] sm:$0xf]
    %v265 = vld [vmem:[#allocation7 + $0x1e0] sm:$0xf]
    %v266 = vld [vmem:[#allocation7 + $0x1e4] sm:$0xf]
    %v267 = vld [vmem:[#allocation7 + $0x1e8] sm:$0xf]
    %v268 = vld [vmem:[#allocation7 + $0x1ec] sm:$0xf]
    %v269 = vld [vmem:[#allocation7 + $0x1f0] sm:$0xf]
    %v270 = vld [vmem:[#allocation7 + $0x1f4] sm:$0xf]
    %v271 = vld [vmem:[#allocation7 + $0x1f8] sm:$0xf]
    %v272 = vld [vmem:[#allocation7 + $0x1fc] sm:$0xf]
    %v273 = vld [vmem:[#allocation7 + $0x200] sm:$0xf]
    %v274 = vld [vmem:[#allocation7 + $0x204] sm:$0xf]
    %v275 = vld [vmem:[#allocation7 + $0x208] sm:$0xf]
    %v276 = vld [vmem:[#allocation7 + $0x20c] sm:$0xf]
    %v277 = vld [vmem:[#allocation7 + $0x210] sm:$0xf]
    %v278 = vld [vmem:[#allocation7 + $0x214] sm:$0xf]
    %v279 = vld [vmem:[#allocation7 + $0x218] sm:$0xf]
    %v280 = vld [vmem:[#allocation7 + $0x21c] sm:$0xf]
    %v281 = vld [vmem:[#allocation7 + $0x220] sm:$0xf]
    %v282 = vld [vmem:[#allocation7 + $0x224] sm:$0xf]
    %v283 = vld [vmem:[#allocation7 + $0x228] sm:$0xf]
    %v284 = vld [vmem:[#allocation7 + $0x22c] sm:$0xf]
    %v285 = vld [vmem:[#allocation7 + $0x230] sm:$0xf]
    %v286 = vld [vmem:[#allocation7 + $0x234] sm:$0xf]
    %v287 = vld [vmem:[#allocation7 + $0x238] sm:$0xf]
    %v288 = vld [vmem:[#allocation7 + $0x23c] sm:$0xf]
    %v289 = vld [vmem:[#allocation7 + $0x240] sm:$0xf]
    %v290 = vld [vmem:[#allocation7 + $0x244] sm:$0xf]
    %v291 = vld [vmem:[#allocation7 + $0x248] sm:$0xf]
    %v292 = vld [vmem:[#allocation7 + $0x24c] sm:$0xf]
    %v293 = vld [vmem:[#allocation7 + $0x250] sm:$0xf]
    %v294 = vld [vmem:[#allocation7 + $0x254] sm:$0xf]
    %v295 = vld [vmem:[#allocation7 + $0x258] sm:$0xf]
    %v296 = vld [vmem:[#allocation7 + $0x25c] sm:$0xf]
    %v297 = vld [vmem:[#allocation7 + $0x260] sm:$0xf]
    %v298 = vld [vmem:[#allocation7 + $0x264] sm:$0xf]
    %v299 = vld [vmem:[#allocation7 + $0x268] sm:$0xf]
    %v300 = vld [vmem:[#allocation7 + $0x26c] sm:$0xf]
    %v301 = vld [vmem:[#allocation7 + $0x270] sm:$0xf]
    %v302 = vld [vmem:[#allocation7 + $0x274] sm:$0xf]
    %v303 = vld [vmem:[#allocation7 + $0x278] sm:$0xf]
    %v304 = vld [vmem:[#allocation7 + $0x27c] sm:$0xf]
    %v305 = vld [vmem:[#allocation7 + $0x280] sm:$0xf]
    %v306 = vld [vmem:[#allocation7 + $0x284] sm:$0xf]
    %v307 = vld [vmem:[#allocation7 + $0x288] sm:$0xf]
    %v308 = vld [vmem:[#allocation7 + $0x28c] sm:$0xf]
    %v309 = vld [vmem:[#allocation7 + $0x290] sm:$0xf]
    %v310 = vld [vmem:[#allocation7 + $0x294] sm:$0xf]
    %v311 = vld [vmem:[#allocation7 + $0x298] sm:$0xf]
    %v312 = vld [vmem:[#allocation7 + $0x29c] sm:$0xf]
    %v313 = vld [vmem:[#allocation7 + $0x2a0] sm:$0xf]
    %v314 = vld [vmem:[#allocation7 + $0x2a4] sm:$0xf]
    %v315 = vld [vmem:[#allocation7 + $0x2a8] sm:$0xf]
    %v316 = vld [vmem:[#allocation7 + $0x2ac] sm:$0xf]
    %v317 = vld [vmem:[#allocation7 + $0x2b0] sm:$0xf]
    %v318 = vld [vmem:[#allocation7 + $0x2b4] sm:$0xf]
    %v319 = vld [vmem:[#allocation7 + $0x2b8] sm:$0xf]
    %v320 = vld [vmem:[#allocation7 + $0x2bc] sm:$0xf]
    %v321 = vld [vmem:[#allocation7 + $0x2c0] sm:$0xf]
    %v322 = vld [vmem:[#allocation7 + $0x2c4] sm:$0xf]
    %v323 = vld [vmem:[#allocation7 + $0x2c8] sm:$0xf]
    %v324 = vld [vmem:[#allocation7 + $0x2cc] sm:$0xf]
    %v325 = vld [vmem:[#allocation7 + $0x2d0] sm:$0xf]
    %v326 = vld [vmem:[#allocation7 + $0x2d4] sm:$0xf]
    %v327 = vld [vmem:[#allocation7 + $0x2d8] sm:$0xf]
    %v328 = vld [vmem:[#allocation7 + $0x2dc] sm:$0xf]
    %v329 = vld [vmem:[#allocation7 + $0x2e0] sm:$0xf]
    %v330 = vld [vmem:[#allocation7 + $0x2e4] sm:$0xf]
    %v331 = vld [vmem:[#allocation7 + $0x2e8] sm:$0xf]
    %v332 = vld [vmem:[#allocation7 + $0x2ec] sm:$0xf]
    %v333 = vld [vmem:[#allocation7 + $0x2f0] sm:$0xf]
    %v334 = vld [vmem:[#allocation7 + $0x2f4] sm:$0xf]
    %v335 = vld [vmem:[#allocation7 + $0x2f8] sm:$0xf]
    %v336 = vld [vmem:[#allocation7 + $0x2fc] sm:$0xf]
    %v337 = vld [vmem:[#allocation7 + $0x300] sm:$0xf]
    %v338 = vld [vmem:[#allocation7 + $0x304] sm:$0xf]
    %v339 = vld [vmem:[#allocation7 + $0x308] sm:$0xf]
    %v340 = vld [vmem:[#allocation7 + $0x30c] sm:$0xf]
    %v341 = vld [vmem:[#allocation7 + $0x310] sm:$0xf]
    %v342 = vld [vmem:[#allocation7 + $0x314] sm:$0xf]
    %v343 = vld [vmem:[#allocation7 + $0x318] sm:$0xf]
    %v344 = vld [vmem:[#allocation7 + $0x31c] sm:$0xf]
    %v345 = vld [vmem:[#allocation7 + $0x320] sm:$0xf]
    %v346 = vld [vmem:[#allocation7 + $0x324] sm:$0xf]
    %v347 = vld [vmem:[#allocation7 + $0x328] sm:$0xf]
    %v348 = vld [vmem:[#allocation7 + $0x32c] sm:$0xf]
    %v349 = vld [vmem:[#allocation7 + $0x330] sm:$0xf]
    %v350 = vld [vmem:[#allocation7 + $0x334] sm:$0xf]
    %v351 = vld [vmem:[#allocation7 + $0x338] sm:$0xf]
    %v352 = vld [vmem:[#allocation7 + $0x33c] sm:$0xf]
    %v353 = vld [vmem:[#allocation7 + $0x340] sm:$0xf]
    %v354 = vld [vmem:[#allocation7 + $0x344] sm:$0xf]
    %v355 = vld [vmem:[#allocation7 + $0x348] sm:$0xf]
    %v356 = vld [vmem:[#allocation7 + $0x34c] sm:$0xf]
    %v357 = vld [vmem:[#allocation7 + $0x350] sm:$0xf]
    %v358 = vld [vmem:[#allocation7 + $0x354] sm:$0xf]
    %v359 = vld [vmem:[#allocation7 + $0x358] sm:$0xf]
    %v360 = vld [vmem:[#allocation7 + $0x35c] sm:$0xf]
    %v361 = vld [vmem:[#allocation7 + $0x360] sm:$0xf]
    %v362 = vld [vmem:[#allocation7 + $0x364] sm:$0xf]
    %v363 = vld [vmem:[#allocation7 + $0x368] sm:$0xf]
    %v364 = vld [vmem:[#allocation7 + $0x36c] sm:$0xf]
    %v365 = vld [vmem:[#allocation7 + $0x370] sm:$0xf]
    %v366 = vld [vmem:[#allocation7 + $0x374] sm:$0xf]
    %v367 = vld [vmem:[#allocation7 + $0x378] sm:$0xf]
    %v368 = vld [vmem:[#allocation7 + $0x37c] sm:$0xf]
    %v369 = vld [vmem:[#allocation7 + $0x380] sm:$0xf]
    %v370 = vld [vmem:[#allocation7 + $0x384] sm:$0xf]
    %v371 = vld [vmem:[#allocation7 + $0x388] sm:$0xf]
    %v372 = vld [vmem:[#allocation7 + $0x38c] sm:$0xf]
    %v373 = vld [vmem:[#allocation7 + $0x390] sm:$0xf]
    %v374 = vld [vmem:[#allocation7 + $0x394] sm:$0xf]
    %v375 = vld [vmem:[#allocation7 + $0x398] sm:$0xf]
    %v376 = vld [vmem:[#allocation7 + $0x39c] sm:$0xf]
    %v377 = vld [vmem:[#allocation7 + $0x3a0] sm:$0xf]
    %v378 = vld [vmem:[#allocation7 + $0x3a4] sm:$0xf]
    %v379 = vld [vmem:[#allocation7 + $0x3a8] sm:$0xf]
    %v380 = vld [vmem:[#allocation7 + $0x3ac] sm:$0xf]
    %v381 = vld [vmem:[#allocation7 + $0x3b0] sm:$0xf]
    %v382 = vld [vmem:[#allocation7 + $0x3b4] sm:$0xf]
    %v383 = vld [vmem:[#allocation7 + $0x3b8] sm:$0xf]
    %v384 = vld [vmem:[#allocation7 + $0x3bc] sm:$0xf]
    %v385 = vld [vmem:[#allocation7 + $0x3c0] sm:$0xf]
    %v386 = vld [vmem:[#allocation7 + $0x3c4] sm:$0xf]
    %v387 = vld [vmem:[#allocation7 + $0x3c8] sm:$0xf]
    %v388 = vld [vmem:[#allocation7 + $0x3cc] sm:$0xf]
    %v389 = vld [vmem:[#allocation7 + $0x3d0] sm:$0xf]
    %v390 = vld [vmem:[#allocation7 + $0x3d4] sm:$0xf]
    %v391 = vld [vmem:[#allocation7 + $0x3d8] sm:$0xf]
    %v392 = vld [vmem:[#allocation7 + $0x3dc] sm:$0xf]
    %v393 = vld [vmem:[#allocation7 + $0x3e0] sm:$0xf]
    %v394 = vld [vmem:[#allocation7 + $0x3e4] sm:$0xf]
    %v395 = vld [vmem:[#allocation7 + $0x3e8] sm:$0xf]
    %v396 = vld [vmem:[#allocation7 + $0x3ec] sm:$0xf]
    %v397 = vld [vmem:[#allocation7 + $0x3f0] sm:$0xf]
    %v398 = vld [vmem:[#allocation7 + $0x3f4] sm:$0xf]
    %v399 = vld [vmem:[#allocation7 + $0x3f8] sm:$0xf]
    %v400 = vld [vmem:[#allocation7 + $0x3fc] sm:$0xf]
    %v401 = vld [vmem:[#allocation7 + $0x400] sm:$0xf]
    %v402 = vld [vmem:[#allocation7 + $0x404] sm:$0xf]
    %v403 = vld [vmem:[#allocation7 + $0x408] sm:$0xf]
    %v404 = vld [vmem:[#allocation7 + $0x40c] sm:$0xf]
    %v405 = vld [vmem:[#allocation7 + $0x410] sm:$0xf]
    %v406 = vld [vmem:[#allocation7 + $0x414] sm:$0xf]
    %v407 = vld [vmem:[#allocation7 + $0x418] sm:$0xf]
    %v408 = vld [vmem:[#allocation7 + $0x41c] sm:$0xf]
    %v409 = vld [vmem:[#allocation7 + $0x420] sm:$0xf]
    %v410 = vld [vmem:[#allocation7 + $0x424] sm:$0xf]
    %v411 = vld [vmem:[#allocation7 + $0x428] sm:$0xf]
    %v412 = vld [vmem:[#allocation7 + $0x42c] sm:$0xf]
    %v413 = vld [vmem:[#allocation7 + $0x430] sm:$0xf]
    %v414 = vld [vmem:[#allocation7 + $0x434] sm:$0xf]
    %v415 = vld [vmem:[#allocation7 + $0x438] sm:$0xf]
    %v416 = vld [vmem:[#allocation7 + $0x43c] sm:$0xf]
    %v417 = vld [vmem:[#allocation7 + $0x440] sm:$0xf]
    %v418 = vld [vmem:[#allocation7 + $0x444] sm:$0xf]
    %v419 = vld [vmem:[#allocation7 + $0x448] sm:$0xf]
    %v420 = vld [vmem:[#allocation7 + $0x44c] sm:$0xf]
    %v421 = vld [vmem:[#allocation7 + $0x450] sm:$0xf]
    %v422 = vld [vmem:[#allocation7 + $0x454] sm:$0xf]
    %v423 = vld [vmem:[#allocation7 + $0x458] sm:$0xf]
    %v424 = vld [vmem:[#allocation7 + $0x45c] sm:$0xf]
    %v425 = vld [vmem:[#allocation7 + $0x460] sm:$0xf]
    %v426 = vld [vmem:[#allocation7 + $0x464] sm:$0xf]
    %v427 = vld [vmem:[#allocation7 + $0x468] sm:$0xf]
    %v428 = vld [vmem:[#allocation7 + $0x46c] sm:$0xf]
    %v429 = vld [vmem:[#allocation7 + $0x470] sm:$0xf]
    %v430 = vld [vmem:[#allocation7 + $0x474] sm:$0xf]
    %v431 = vld [vmem:[#allocation7 + $0x478] sm:$0xf]
    %v432 = vld [vmem:[#allocation7 + $0x47c] sm:$0xf]
    %v433 = vld [vmem:[#allocation7 + $0x480] sm:$0xf]
    %v434 = vld [vmem:[#allocation7 + $0x484] sm:$0xf]
    %v435 = vld [vmem:[#allocation7 + $0x488] sm:$0xf]
    %v436 = vld [vmem:[#allocation7 + $0x48c] sm:$0xf]
    %v437 = vld [vmem:[#allocation7 + $0x490] sm:$0xf]
    %v438 = vld [vmem:[#allocation7 + $0x494] sm:$0xf]
    %v439 = vld [vmem:[#allocation7 + $0x498] sm:$0xf]
    %v440 = vld [vmem:[#allocation7 + $0x49c] sm:$0xf]
    %v441 = vld [vmem:[#allocation7 + $0x4a0] sm:$0xf]
    %v442 = vld [vmem:[#allocation7 + $0x4a4] sm:$0xf]
    %v443 = vld [vmem:[#allocation7 + $0x4a8] sm:$0xf]
    %v444 = vld [vmem:[#allocation7 + $0x4ac] sm:$0xf]
    %v445 = vld [vmem:[%s3] sm:$0x1]
    %v447 = vperm.slane %v445, 0
    %v469 = vunpack.c.l.b16 %v125
    %v470 = vunpack.c.h.b16 %v125
    %v471 = vunpack.c.l.b16 %v126
    %v472 = vunpack.c.h.b16 %v126
    %v473 = vunpack.c.l.b16 %v127
    %v474 = vunpack.c.h.b16 %v127
    %v475 = vunpack.c.l.b16 %v128
    %v476 = vunpack.c.h.b16 %v128
    %v477 = vunpack.c.l.b16 %v129
    %v478 = vunpack.c.h.b16 %v129
    %v479 = vunpack.c.l.b16 %v130
    %v480 = vunpack.c.h.b16 %v130
    %v481 = vunpack.c.l.b16 %v131
    %v482 = vunpack.c.h.b16 %v131
    %v483 = vunpack.c.l.b16 %v132
    %v484 = vunpack.c.h.b16 %v132
    %v485 = vunpack.c.l.b16 %v133
    %v486 = vunpack.c.h.b16 %v133
    %v487 = vunpack.c.l.b16 %v134
    %v488 = vunpack.c.l.b16 %v135
    %v489 = vunpack.c.h.b16 %v135
    %v490 = vunpack.c.l.b16 %v136
    %v491 = vunpack.c.h.b16 %v136
    %v492 = vunpack.c.l.b16 %v137
    %v493 = vunpack.c.h.b16 %v137
    %v494 = vunpack.c.l.b16 %v138
    %v495 = vunpack.c.h.b16 %v138
    %v496 = vunpack.c.l.b16 %v139
    %v497 = vunpack.c.h.b16 %v139
    %v498 = vunpack.c.l.b16 %v140
    %v499 = vunpack.c.h.b16 %v140
    %v500 = vunpack.c.l.b16 %v141
    %v501 = vunpack.c.h.b16 %v141
    %v502 = vunpack.c.l.b16 %v142
    %v503 = vunpack.c.h.b16 %v142
    %v504 = vunpack.c.l.b16 %v143
    %v505 = vunpack.c.h.b16 %v143
    %v506 = vunpack.c.l.b16 %v144
    %v507 = vpack.c.b16 %v488, %v469
    %v508 = vpack.c.b16 %v489, %v470
    %v509 = vpack.c.b16 %v490, %v471
    %v510 = vpack.c.b16 %v491, %v472
    %v511 = vpack.c.b16 %v492, %v473
    %v512 = vpack.c.b16 %v493, %v474
    %v513 = vpack.c.b16 %v494, %v475
    %v514 = vpack.c.b16 %v495, %v476
    %v515 = vpack.c.b16 %v496, %v477
    %v516 = vpack.c.b16 %v497, %v478
    %v517 = vpack.c.b16 %v498, %v479
    %v518 = vpack.c.b16 %v499, %v480
    %v519 = vpack.c.b16 %v500, %v481
    %v520 = vpack.c.b16 %v501, %v482
    %v521 = vpack.c.b16 %v502, %v483
    %v522 = vpack.c.b16 %v503, %v484
    %v523 = vpack.c.b16 %v504, %v485
    %v524 = vpack.c.b16 %v505, %v486
    %v525 = vpack.c.b16 %v506, %v487
    %v844 = vunpack.c.l.b16 %v145
    %v845 = vunpack.c.l.b16 %v146
    %v846 = vunpack.c.l.b16 %v147
    %v847 = vunpack.c.l.b16 %v148
    %v848 = vunpack.c.l.b16 %v149
    %v849 = vunpack.c.l.b16 %v150
    %v850 = vunpack.c.l.b16 %v151
    %v851 = vunpack.c.l.b16 %v152
    %v852 = vunpack.c.l.b16 %v153
    %v853 = vunpack.c.l.b16 %v154
    %v854 = vunpack.c.l.b16 %v155
    %v855 = vunpack.c.l.b16 %v156
    %v856 = vunpack.c.l.b16 %v157
    %v857 = vunpack.c.l.b16 %v158
    %v858 = vunpack.c.l.b16 %v159
    %v859 = vunpack.c.l.b16 %v160
    %v860 = vunpack.c.l.b16 %v161
    %v861 = vunpack.c.l.b16 %v162
    %v862 = vunpack.c.l.b16 %v163
    %v863 = vunpack.c.l.b16 %v164
    %v864 = vunpack.c.l.b16 %v165
    %v865 = vunpack.c.l.b16 %v166
    %v866 = vunpack.c.l.b16 %v167
    %v867 = vunpack.c.l.b16 %v168
    %v868 = vunpack.c.l.b16 %v169
    %v869 = vunpack.c.l.b16 %v170
    %v870 = vunpack.c.l.b16 %v171
    %v871 = vunpack.c.l.b16 %v172
    %v872 = vunpack.c.l.b16 %v173
    %v873 = vunpack.c.l.b16 %v174
    %v874 = vunpack.c.l.b16 %v175
    %v875 = vunpack.c.l.b16 %v176
    %v876 = vunpack.c.l.b16 %v177
    %v877 = vunpack.c.l.b16 %v178
    %v878 = vunpack.c.l.b16 %v179
    %v879 = vunpack.c.l.b16 %v180
    %v880 = vunpack.c.l.b16 %v181
    %v881 = vunpack.c.l.b16 %v182
    %v882 = vunpack.c.l.b16 %v183
    %v883 = vunpack.c.l.b16 %v184
    %v884 = vunpack.c.l.b16 %v185
    %v885 = vunpack.c.l.b16 %v186
    %v886 = vunpack.c.l.b16 %v187
    %v887 = vunpack.c.l.b16 %v188
    %v888 = vunpack.c.l.b16 %v189
    %v889 = vunpack.c.l.b16 %v190
    %v890 = vunpack.c.l.b16 %v191
    %v891 = vunpack.c.l.b16 %v192
    %v892 = vunpack.c.l.b16 %v193
    %v893 = vunpack.c.l.b16 %v194
    %v894 = vunpack.c.l.b16 %v195
    %v895 = vunpack.c.l.b16 %v196
    %v896 = vunpack.c.l.b16 %v197
    %v897 = vunpack.c.l.b16 %v198
    %v898 = vunpack.c.l.b16 %v199
    %v899 = vunpack.c.l.b16 %v200
    %v900 = vunpack.c.l.b16 %v201
    %v901 = vunpack.c.l.b16 %v202
    %v902 = vunpack.c.l.b16 %v203
    %v903 = vunpack.c.l.b16 %v204
    %v904 = vunpack.c.l.b16 %v205
    %v905 = vunpack.c.l.b16 %v206
    %v906 = vunpack.c.l.b16 %v207
    %v907 = vunpack.c.l.b16 %v208
    %v908 = vunpack.c.l.b16 %v209
    %v909 = vunpack.c.l.b16 %v210
    %v910 = vunpack.c.l.b16 %v211
    %v911 = vunpack.c.l.b16 %v212
    %v912 = vunpack.c.l.b16 %v213
    %v913 = vunpack.c.l.b16 %v214
    %v914 = vunpack.c.l.b16 %v215
    %v915 = vunpack.c.l.b16 %v216
    %v916 = vunpack.c.l.b16 %v217
    %v917 = vunpack.c.l.b16 %v218
    %v918 = vunpack.c.l.b16 %v219
    %v919 = vunpack.c.l.b16 %v220
    %v920 = vunpack.c.l.b16 %v221
    %v921 = vunpack.c.l.b16 %v222
    %v922 = vunpack.c.l.b16 %v223
    %v923 = vunpack.c.l.b16 %v224
    %v924 = vunpack.c.l.b16 %v225
    %v925 = vunpack.c.l.b16 %v226
    %v926 = vunpack.c.l.b16 %v227
    %v927 = vunpack.c.l.b16 %v228
    %v928 = vunpack.c.l.b16 %v229
    %v929 = vunpack.c.l.b16 %v230
    %v930 = vunpack.c.l.b16 %v231
    %v931 = vunpack.c.l.b16 %v232
    %v932 = vunpack.c.l.b16 %v233
    %v933 = vunpack.c.l.b16 %v234
    %v934 = vunpack.c.l.b16 %v235
    %v935 = vunpack.c.l.b16 %v236
    %v936 = vunpack.c.l.b16 %v237
    %v937 = vunpack.c.l.b16 %v238
    %v938 = vunpack.c.l.b16 %v239
    %v939 = vunpack.c.l.b16 %v240
    %v940 = vunpack.c.l.b16 %v241
    %v941 = vunpack.c.l.b16 %v242
    %v942 = vunpack.c.l.b16 %v243
    %v943 = vunpack.c.l.b16 %v244
    %v944 = vunpack.c.l.b16 %v245
    %v945 = vunpack.c.l.b16 %v246
    %v946 = vunpack.c.l.b16 %v247
    %v947 = vunpack.c.l.b16 %v248
    %v948 = vunpack.c.l.b16 %v249
    %v949 = vunpack.c.l.b16 %v250
    %v950 = vunpack.c.l.b16 %v251
    %v951 = vunpack.c.l.b16 %v252
    %v952 = vunpack.c.l.b16 %v253
    %v953 = vunpack.c.l.b16 %v254
    %v954 = vunpack.c.l.b16 %v255
    %v955 = vunpack.c.l.b16 %v256
    %v956 = vunpack.c.l.b16 %v257
    %v957 = vunpack.c.l.b16 %v258
    %v958 = vunpack.c.l.b16 %v259
    %v959 = vunpack.c.l.b16 %v260
    %v960 = vunpack.c.l.b16 %v261
    %v961 = vunpack.c.l.b16 %v262
    %v962 = vunpack.c.l.b16 %v263
    %v963 = vunpack.c.l.b16 %v264
    %v964 = vunpack.c.l.b16 %v265
    %v965 = vunpack.c.l.b16 %v266
    %v966 = vunpack.c.l.b16 %v267
    %v967 = vunpack.c.l.b16 %v268
    %v968 = vunpack.c.l.b16 %v269
    %v969 = vunpack.c.l.b16 %v270
    %v970 = vunpack.c.l.b16 %v271
    %v971 = vunpack.c.l.b16 %v272
    %v972 = vunpack.c.l.b16 %v273
    %v973 = vunpack.c.l.b16 %v274
    %v974 = vunpack.c.l.b16 %v275
    %v975 = vunpack.c.l.b16 %v276
    %v976 = vunpack.c.l.b16 %v277
    %v977 = vunpack.c.l.b16 %v278
    %v978 = vunpack.c.l.b16 %v279
    %v979 = vunpack.c.l.b16 %v280
    %v980 = vunpack.c.l.b16 %v281
    %v981 = vunpack.c.l.b16 %v282
    %v982 = vunpack.c.l.b16 %v283
    %v983 = vunpack.c.l.b16 %v284
    %v984 = vunpack.c.l.b16 %v285
    %v985 = vunpack.c.l.b16 %v286
    %v986 = vunpack.c.l.b16 %v287
    %v987 = vunpack.c.l.b16 %v288
    %v988 = vunpack.c.l.b16 %v289
    %v989 = vunpack.c.l.b16 %v290
    %v990 = vunpack.c.l.b16 %v291
    %v991 = vunpack.c.l.b16 %v292
    %v992 = vunpack.c.l.b16 %v293
    %v993 = vunpack.c.l.b16 %v294
    %v994 = vunpack.c.l.b16 %v295
    %v995 = vunpack.c.l.b16 %v296
    %v996 = vunpack.c.l.b16 %v297
    %v997 = vunpack.c.l.b16 %v298
    %v998 = vunpack.c.l.b16 %v299
    %v999 = vunpack.c.l.b16 %v300
    %v1000 = vunpack.c.l.b16 %v301
    %v1001 = vunpack.c.l.b16 %v302
    %v1002 = vunpack.c.l.b16 %v303
    %v1003 = vunpack.c.l.b16 %v304
    %v1004 = vunpack.c.l.b16 %v305
    %v1005 = vunpack.c.l.b16 %v306
    %v1006 = vunpack.c.l.b16 %v307
    %v1007 = vunpack.c.l.b16 %v308
    %v1008 = vunpack.c.l.b16 %v309
    %v1009 = vunpack.c.l.b16 %v310
    %v1010 = vunpack.c.l.b16 %v311
    %v1011 = vunpack.c.l.b16 %v312
    %v1012 = vunpack.c.l.b16 %v313
    %v1013 = vunpack.c.l.b16 %v314
    %v1014 = vunpack.c.l.b16 %v315
    %v1015 = vunpack.c.l.b16 %v316
    %v1016 = vunpack.c.l.b16 %v317
    %v1017 = vunpack.c.l.b16 %v318
    %v1018 = vunpack.c.l.b16 %v319
    %v1019 = vunpack.c.l.b16 %v320
    %v1020 = vunpack.c.l.b16 %v321
    %v1021 = vunpack.c.l.b16 %v322
    %v1022 = vunpack.c.l.b16 %v323
    %v1023 = vunpack.c.l.b16 %v324
    %v1024 = vunpack.c.l.b16 %v325
    %v1025 = vunpack.c.l.b16 %v326
    %v1026 = vunpack.c.l.b16 %v327
    %v1027 = vunpack.c.l.b16 %v328
    %v1028 = vunpack.c.l.b16 %v329
    %v1029 = vunpack.c.l.b16 %v330
    %v1030 = vunpack.c.l.b16 %v331
    %v1031 = vunpack.c.l.b16 %v332
    %v1032 = vunpack.c.l.b16 %v333
    %v1033 = vunpack.c.l.b16 %v334
    %v1034 = vunpack.c.l.b16 %v335
    %v1035 = vunpack.c.l.b16 %v336
    %v1036 = vunpack.c.l.b16 %v337
    %v1037 = vunpack.c.l.b16 %v338
    %v1038 = vunpack.c.l.b16 %v339
    %v1039 = vunpack.c.l.b16 %v340
    %v1040 = vunpack.c.l.b16 %v341
    %v1041 = vunpack.c.l.b16 %v342
    %v1042 = vunpack.c.l.b16 %v343
    %v1043 = vunpack.c.l.b16 %v344
    %v1044 = vunpack.c.l.b16 %v345
    %v1045 = vunpack.c.l.b16 %v346
    %v1046 = vunpack.c.l.b16 %v347
    %v1047 = vunpack.c.l.b16 %v348
    %v1048 = vunpack.c.l.b16 %v349
    %v1049 = vunpack.c.l.b16 %v350
    %v1050 = vunpack.c.l.b16 %v351
    %v1051 = vunpack.c.l.b16 %v352
    %v1052 = vunpack.c.l.b16 %v353
    %v1053 = vunpack.c.l.b16 %v354
    %v1054 = vunpack.c.l.b16 %v355
    %v1055 = vunpack.c.l.b16 %v356
    %v1056 = vunpack.c.l.b16 %v357
    %v1057 = vunpack.c.l.b16 %v358
    %v1058 = vunpack.c.l.b16 %v359
    %v1059 = vunpack.c.l.b16 %v360
    %v1060 = vunpack.c.l.b16 %v361
    %v1061 = vunpack.c.l.b16 %v362
    %v1062 = vunpack.c.l.b16 %v363
    %v1063 = vunpack.c.l.b16 %v364
    %v1064 = vunpack.c.l.b16 %v365
    %v1065 = vunpack.c.l.b16 %v366
    %v1066 = vunpack.c.l.b16 %v367
    %v1067 = vunpack.c.l.b16 %v368
    %v1068 = vunpack.c.l.b16 %v369
    %v1069 = vunpack.c.l.b16 %v370
    %v1070 = vunpack.c.l.b16 %v371
    %v1071 = vunpack.c.l.b16 %v372
    %v1072 = vunpack.c.l.b16 %v373
    %v1073 = vunpack.c.l.b16 %v374
    %v1074 = vunpack.c.l.b16 %v375
    %v1075 = vunpack.c.l.b16 %v376
    %v1076 = vunpack.c.l.b16 %v377
    %v1077 = vunpack.c.l.b16 %v378
    %v1078 = vunpack.c.l.b16 %v379
    %v1079 = vunpack.c.l.b16 %v380
    %v1080 = vunpack.c.l.b16 %v381
    %v1081 = vunpack.c.l.b16 %v382
    %v1082 = vunpack.c.l.b16 %v383
    %v1083 = vunpack.c.l.b16 %v384
    %v1084 = vunpack.c.l.b16 %v385
    %v1085 = vunpack.c.l.b16 %v386
    %v1086 = vunpack.c.l.b16 %v387
    %v1087 = vunpack.c.l.b16 %v388
    %v1088 = vunpack.c.l.b16 %v389
    %v1089 = vunpack.c.l.b16 %v390
    %v1090 = vunpack.c.l.b16 %v391
    %v1091 = vunpack.c.l.b16 %v392
    %v1092 = vunpack.c.l.b16 %v393
    %v1093 = vunpack.c.l.b16 %v394
    %v1094 = vunpack.c.l.b16 %v395
    %v1095 = vunpack.c.l.b16 %v396
    %v1096 = vunpack.c.l.b16 %v397
    %v1097 = vunpack.c.l.b16 %v398
    %v1098 = vunpack.c.l.b16 %v399
    %v1099 = vunpack.c.l.b16 %v400
    %v1100 = vunpack.c.l.b16 %v401
    %v1101 = vunpack.c.l.b16 %v402
    %v1102 = vunpack.c.l.b16 %v403
    %v1103 = vunpack.c.l.b16 %v404
    %v1104 = vunpack.c.l.b16 %v405
    %v1105 = vunpack.c.l.b16 %v406
    %v1106 = vunpack.c.l.b16 %v407
    %v1107 = vunpack.c.l.b16 %v408
    %v1108 = vunpack.c.l.b16 %v409
    %v1109 = vunpack.c.l.b16 %v410
    %v1110 = vunpack.c.l.b16 %v411
    %v1111 = vunpack.c.l.b16 %v412
    %v1112 = vunpack.c.l.b16 %v413
    %v1113 = vunpack.c.l.b16 %v414
    %v1114 = vunpack.c.l.b16 %v415
    %v1115 = vunpack.c.l.b16 %v416
    %v1116 = vunpack.c.l.b16 %v417
    %v1117 = vunpack.c.l.b16 %v418
    %v1118 = vunpack.c.l.b16 %v419
    %v1119 = vunpack.c.l.b16 %v420
    %v1120 = vunpack.c.l.b16 %v421
    %v1121 = vunpack.c.l.b16 %v422
    %v1122 = vunpack.c.l.b16 %v423
    %v1123 = vunpack.c.l.b16 %v424
    %v1124 = vunpack.c.l.b16 %v425
    %v1125 = vunpack.c.l.b16 %v426
    %v1126 = vunpack.c.l.b16 %v427
    %v1127 = vunpack.c.l.b16 %v428
    %v1128 = vunpack.c.l.b16 %v429
    %v1129 = vunpack.c.l.b16 %v430
    %v1130 = vunpack.c.l.b16 %v431
    %v1131 = vunpack.c.l.b16 %v432
    %v1132 = vunpack.c.l.b16 %v433
    %v1133 = vunpack.c.l.b16 %v434
    %v1134 = vunpack.c.l.b16 %v435
    %v1135 = vunpack.c.l.b16 %v436
    %v1136 = vunpack.c.l.b16 %v437
    %v1137 = vunpack.c.l.b16 %v438
    %v1138 = vunpack.c.l.b16 %v439
    %v1139 = vunpack.c.l.b16 %v440
    %v1140 = vunpack.c.l.b16 %v441
    %v1141 = vunpack.c.l.b16 %v442
    %v1142 = vunpack.c.l.b16 %v443
    %v1143 = vunpack.c.l.b16 %v444
    %v1144 = vpack.c.b16 %v845, %v844
    %v1145 = vpack.c.b16 %v847, %v846
    %v1146 = vpack.c.b16 %v849, %v848
    %v1147 = vpack.c.b16 %v851, %v850
    %v1148 = vpack.c.b16 %v853, %v852
    %v1149 = vpack.c.b16 %v855, %v854
    %v1150 = vpack.c.b16 %v857, %v856
    %v1151 = vpack.c.b16 %v859, %v858
    %v1152 = vpack.c.b16 %v861, %v860
    %v1153 = vpack.c.b16 %v863, %v862
    %v1154 = vpack.c.b16 %v865, %v864
    %v1155 = vpack.c.b16 %v867, %v866
    %v1156 = vpack.c.b16 %v869, %v868
    %v1157 = vpack.c.b16 %v871, %v870
    %v1158 = vpack.c.b16 %v873, %v872
    %v1159 = vpack.c.b16 %v875, %v874
    %v1160 = vpack.c.b16 %v877, %v876
    %v1161 = vpack.c.b16 %v879, %v878
    %v1162 = vpack.c.b16 %v881, %v880
    %v1163 = vpack.c.b16 %v883, %v882
    %v1164 = vpack.c.b16 %v885, %v884
    %v1165 = vpack.c.b16 %v887, %v886
    %v1166 = vpack.c.b16 %v889, %v888
    %v1167 = vpack.c.b16 %v891, %v890
    %v1168 = vpack.c.b16 %v893, %v892
    %v1169 = vpack.c.b16 %v895, %v894
    %v1170 = vpack.c.b16 %v897, %v896
    %v1171 = vpack.c.b16 %v899, %v898
    %v1172 = vpack.c.b16 %v901, %v900
    %v1173 = vpack.c.b16 %v903, %v902
    %v1174 = vpack.c.b16 %v905, %v904
    %v1175 = vpack.c.b16 %v907, %v906
    %v1176 = vpack.c.b16 %v909, %v908
    %v1177 = vpack.c.b16 %v911, %v910
    %v1178 = vpack.c.b16 %v913, %v912
    %v1179 = vpack.c.b16 %v915, %v914
    %v1180 = vpack.c.b16 %v917, %v916
    %v1181 = vpack.c.b16 %v919, %v918
    %v1182 = vpack.c.b16 %v921, %v920
    %v1183 = vpack.c.b16 %v923, %v922
    %v1184 = vpack.c.b16 %v925, %v924
    %v1185 = vpack.c.b16 %v927, %v926
    %v1186 = vpack.c.b16 %v929, %v928
    %v1187 = vpack.c.b16 %v931, %v930
    %v1188 = vpack.c.b16 %v933, %v932
    %v1189 = vpack.c.b16 %v935, %v934
    %v1190 = vpack.c.b16 %v937, %v936
    %v1191 = vpack.c.b16 %v939, %v938
    %v1192 = vpack.c.b16 %v941, %v940
    %v1193 = vpack.c.b16 %v943, %v942
    %v1194 = vpack.c.b16 %v945, %v944
    %v1195 = vpack.c.b16 %v947, %v946
    %v1196 = vpack.c.b16 %v949, %v948
    %v1197 = vpack.c.b16 %v951, %v950
    %v1198 = vpack.c.b16 %v953, %v952
    %v1199 = vpack.c.b16 %v955, %v954
    %v1200 = vpack.c.b16 %v957, %v956
    %v1201 = vpack.c.b16 %v959, %v958
    %v1202 = vpack.c.b16 %v961, %v960
    %v1203 = vpack.c.b16 %v963, %v962
    %v1204 = vpack.c.b16 %v965, %v964
    %v1205 = vpack.c.b16 %v967, %v966
    %v1206 = vpack.c.b16 %v969, %v968
    %v1207 = vpack.c.b16 %v971, %v970
    %v1208 = vpack.c.b16 %v973, %v972
    %v1209 = vpack.c.b16 %v975, %v974
    %v1210 = vpack.c.b16 %v977, %v976
    %v1211 = vpack.c.b16 %v979, %v978
    %v1212 = vpack.c.b16 %v981, %v980
    %v1213 = vpack.c.b16 %v983, %v982
    %v1214 = vpack.c.b16 %v985, %v984
    %v1215 = vpack.c.b16 %v987, %v986
    %v1216 = vpack.c.b16 %v989, %v988
    %v1217 = vpack.c.b16 %v991, %v990
    %v1218 = vpack.c.b16 %v993, %v992
    %v1219 = vpack.c.b16 %v995, %v994
    %v1220 = vpack.c.b16 %v997, %v996
    %v1221 = vpack.c.b16 %v999, %v998
    %v1222 = vpack.c.b16 %v1001, %v1000
    %v1223 = vpack.c.b16 %v1003, %v1002
    %v1224 = vpack.c.b16 %v1005, %v1004
    %v1225 = vpack.c.b16 %v1007, %v1006
    %v1226 = vpack.c.b16 %v1009, %v1008
    %v1227 = vpack.c.b16 %v1011, %v1010
    %v1228 = vpack.c.b16 %v1013, %v1012
    %v1229 = vpack.c.b16 %v1015, %v1014
    %v1230 = vpack.c.b16 %v1017, %v1016
    %v1231 = vpack.c.b16 %v1019, %v1018
    %v1232 = vpack.c.b16 %v1021, %v1020
    %v1233 = vpack.c.b16 %v1023, %v1022
    %v1234 = vpack.c.b16 %v1025, %v1024
    %v1235 = vpack.c.b16 %v1027, %v1026
    %v1236 = vpack.c.b16 %v1029, %v1028
    %v1237 = vpack.c.b16 %v1031, %v1030
    %v1238 = vpack.c.b16 %v1033, %v1032
    %v1239 = vpack.c.b16 %v1035, %v1034
    %v1240 = vpack.c.b16 %v1037, %v1036
    %v1241 = vpack.c.b16 %v1039, %v1038
    %v1242 = vpack.c.b16 %v1041, %v1040
    %v1243 = vpack.c.b16 %v1043, %v1042
    %v1244 = vpack.c.b16 %v1045, %v1044
    %v1245 = vpack.c.b16 %v1047, %v1046
    %v1246 = vpack.c.b16 %v1049, %v1048
    %v1247 = vpack.c.b16 %v1051, %v1050
    %v1248 = vpack.c.b16 %v1053, %v1052
    %v1249 = vpack.c.b16 %v1055, %v1054
    %v1250 = vpack.c.b16 %v1057, %v1056
    %v1251 = vpack.c.b16 %v1059, %v1058
    %v1252 = vpack.c.b16 %v1061, %v1060
    %v1253 = vpack.c.b16 %v1063, %v1062
    %v1254 = vpack.c.b16 %v1065, %v1064
    %v1255 = vpack.c.b16 %v1067, %v1066
    %v1256 = vpack.c.b16 %v1069, %v1068
    %v1257 = vpack.c.b16 %v1071, %v1070
    %v1258 = vpack.c.b16 %v1073, %v1072
    %v1259 = vpack.c.b16 %v1075, %v1074
    %v1260 = vpack.c.b16 %v1077, %v1076
    %v1261 = vpack.c.b16 %v1079, %v1078
    %v1262 = vpack.c.b16 %v1081, %v1080
    %v1263 = vpack.c.b16 %v1083, %v1082
    %v1264 = vpack.c.b16 %v1085, %v1084
    %v1265 = vpack.c.b16 %v1087, %v1086
    %v1266 = vpack.c.b16 %v1089, %v1088
    %v1267 = vpack.c.b16 %v1091, %v1090
    %v1268 = vpack.c.b16 %v1093, %v1092
    %v1269 = vpack.c.b16 %v1095, %v1094
    %v1270 = vpack.c.b16 %v1097, %v1096
    %v1271 = vpack.c.b16 %v1099, %v1098
    %v1272 = vpack.c.b16 %v1101, %v1100
    %v1273 = vpack.c.b16 %v1103, %v1102
    %v1274 = vpack.c.b16 %v1105, %v1104
    %v1275 = vpack.c.b16 %v1107, %v1106
    %v1276 = vpack.c.b16 %v1109, %v1108
    %v1277 = vpack.c.b16 %v1111, %v1110
    %v1278 = vpack.c.b16 %v1113, %v1112
    %v1279 = vpack.c.b16 %v1115, %v1114
    %v1280 = vpack.c.b16 %v1117, %v1116
    %v1281 = vpack.c.b16 %v1119, %v1118
    %v1282 = vpack.c.b16 %v1121, %v1120
    %v1283 = vpack.c.b16 %v1123, %v1122
    %v1284 = vpack.c.b16 %v1125, %v1124
    %v1285 = vpack.c.b16 %v1127, %v1126
    %v1286 = vpack.c.b16 %v1129, %v1128
    %v1287 = vpack.c.b16 %v1131, %v1130
    %v1288 = vpack.c.b16 %v1133, %v1132
    %v1289 = vpack.c.b16 %v1135, %v1134
    %v1290 = vpack.c.b16 %v1137, %v1136
    %v1291 = vpack.c.b16 %v1139, %v1138
    %v1292 = vpack.c.b16 %v1141, %v1140
    %v1293 = vpack.c.b16 %v1143, %v1142
    %vm1444 = vcmask 785408
    %v1446 = vsel %vm1444, %v525, 0
    %1448 = vmatpush.bf16.msra.mxu0 %v1151
    %1449 = vmatpush.bf16.msra.mxu0 %v1150
    %1450 = vmatpush.bf16.msra.mxu0 %v1149
    %1451 = vmatpush.bf16.msra.mxu0 %v1148
    %1452 = vmatpush.bf16.msra.mxu0 %v1147
    %1453 = vmatpush.bf16.msra.mxu0 %v1146
    %1454 = vmatpush.bf16.msra.mxu0 %v1145
    %1455 = vmatpush.bf16.msra.mxu0 %v1144
    %1456 = vmatmul.bf16.gmra.mxu0 %v507
    %v1457 = vpop.f32.mrf.mxu0
    %v1458 = vadd.f32 %v447, %v1457
    %v1459 = vpop.f32.mrf.mxu0
    %v1460 = vadd.f32 %v447, %v1459
    %1461 = vdwg.mxu0
    %1462 = vmatpush.bf16.msra.mxu0 %v1159
    %1463 = vmatpush.bf16.msra.mxu0 %v1158
    %1464 = vmatpush.bf16.msra.mxu0 %v1157
    %1465 = vmatpush.bf16.msra.mxu0 %v1156
    %1466 = vmatpush.bf16.msra.mxu0 %v1155
    %1467 = vmatpush.bf16.msra.mxu0 %v1154
    %1468 = vmatpush.bf16.msra.mxu0 %v1153
    %1469 = vmatpush.bf16.msra.mxu0 %v1152
    %1470 = vmatmul.bf16.gmra.mxu0 %v508
    %v1471 = vpop.f32.mrf.mxu0
    %v1472 = vadd.f32 %v1458, %v1471
    %v1473 = vpop.f32.mrf.mxu0
    %v1474 = vadd.f32 %v1460, %v1473
    %1475 = vdwg.mxu0
    %1476 = vmatpush.bf16.msra.mxu0 %v1167
    %1477 = vmatpush.bf16.msra.mxu0 %v1166
    %1478 = vmatpush.bf16.msra.mxu0 %v1165
    %1479 = vmatpush.bf16.msra.mxu0 %v1164
    %1480 = vmatpush.bf16.msra.mxu0 %v1163
    %1481 = vmatpush.bf16.msra.mxu0 %v1162
    %1482 = vmatpush.bf16.msra.mxu0 %v1161
    %1483 = vmatpush.bf16.msra.mxu0 %v1160
    %1484 = vmatmul.bf16.gmra.mxu0 %v509
    %v1485 = vpop.f32.mrf.mxu0
    %v1486 = vadd.f32 %v1472, %v1485
    %v1487 = vpop.f32.mrf.mxu0
    %v1488 = vadd.f32 %v1474, %v1487
    %1489 = vdwg.mxu0
    %1490 = vmatpush.bf16.msra.mxu0 %v1175
    %1491 = vmatpush.bf16.msra.mxu0 %v1174
    %1492 = vmatpush.bf16.msra.mxu0 %v1173
    %1493 = vmatpush.bf16.msra.mxu0 %v1172
    %1494 = vmatpush.bf16.msra.mxu0 %v1171
    %1495 = vmatpush.bf16.msra.mxu0 %v1170
    %1496 = vmatpush.bf16.msra.mxu0 %v1169
    %1497 = vmatpush.bf16.msra.mxu0 %v1168
    %1498 = vmatmul.bf16.gmra.mxu0 %v510
    %v1499 = vpop.f32.mrf.mxu0
    %v1500 = vadd.f32 %v1486, %v1499
    %v1501 = vpop.f32.mrf.mxu0
    %v1502 = vadd.f32 %v1488, %v1501
    %1503 = vdwg.mxu0
    %1504 = vmatpush.bf16.msra.mxu0 %v1183
    %1505 = vmatpush.bf16.msra.mxu0 %v1182
    %1506 = vmatpush.bf16.msra.mxu0 %v1181
    %1507 = vmatpush.bf16.msra.mxu0 %v1180
    %1508 = vmatpush.bf16.msra.mxu0 %v1179
    %1509 = vmatpush.bf16.msra.mxu0 %v1178
    %1510 = vmatpush.bf16.msra.mxu0 %v1177
    %1511 = vmatpush.bf16.msra.mxu0 %v1176
    %1512 = vmatmul.bf16.gmra.mxu0 %v511
    %v1513 = vpop.f32.mrf.mxu0
    %v1514 = vadd.f32 %v1500, %v1513
    %v1515 = vpop.f32.mrf.mxu0
    %v1516 = vadd.f32 %v1502, %v1515
    %1517 = vdwg.mxu0
    %1518 = vmatpush.bf16.msra.mxu0 %v1191
    %1519 = vmatpush.bf16.msra.mxu0 %v1190
    %1520 = vmatpush.bf16.msra.mxu0 %v1189
    %1521 = vmatpush.bf16.msra.mxu0 %v1188
    %1522 = vmatpush.bf16.msra.mxu0 %v1187
    %1523 = vmatpush.bf16.msra.mxu0 %v1186
    %1524 = vmatpush.bf16.msra.mxu0 %v1185
    %1525 = vmatpush.bf16.msra.mxu0 %v1184
    %1526 = vmatmul.bf16.gmra.mxu0 %v512
    %v1527 = vpop.f32.mrf.mxu0
    %v1528 = vadd.f32 %v1514, %v1527
    %v1529 = vpop.f32.mrf.mxu0
    %v1530 = vadd.f32 %v1516, %v1529
    %1531 = vdwg.mxu0
    %1532 = vmatpush.bf16.msra.mxu0 %v1199
    %1533 = vmatpush.bf16.msra.mxu0 %v1198
    %1534 = vmatpush.bf16.msra.mxu0 %v1197
    %1535 = vmatpush.bf16.msra.mxu0 %v1196
    %1536 = vmatpush.bf16.msra.mxu0 %v1195
    %1537 = vmatpush.bf16.msra.mxu0 %v1194
    %1538 = vmatpush.bf16.msra.mxu0 %v1193
    %1539 = vmatpush.bf16.msra.mxu0 %v1192
    %1540 = vmatmul.bf16.gmra.mxu0 %v513
    %v1541 = vpop.f32.mrf.mxu0
    %v1542 = vadd.f32 %v1528, %v1541
    %v1543 = vpop.f32.mrf.mxu0
    %v1544 = vadd.f32 %v1530, %v1543
    %1545 = vdwg.mxu0
    %1546 = vmatpush.bf16.msra.mxu0 %v1207
    %1547 = vmatpush.bf16.msra.mxu0 %v1206
    %1548 = vmatpush.bf16.msra.mxu0 %v1205
    %1549 = vmatpush.bf16.msra.mxu0 %v1204
    %1550 = vmatpush.bf16.msra.mxu0 %v1203
    %1551 = vmatpush.bf16.msra.mxu0 %v1202
    %1552 = vmatpush.bf16.msra.mxu0 %v1201
    %1553 = vmatpush.bf16.msra.mxu0 %v1200
    %1554 = vmatmul.bf16.gmra.mxu0 %v514
    %v1555 = vpop.f32.mrf.mxu0
    %v1556 = vadd.f32 %v1542, %v1555
    %v1557 = vpop.f32.mrf.mxu0
    %v1558 = vadd.f32 %v1544, %v1557
    %1559 = vdwg.mxu0
    %1560 = vmatpush.bf16.msra.mxu0 %v1215
    %1561 = vmatpush.bf16.msra.mxu0 %v1214
    %1562 = vmatpush.bf16.msra.mxu0 %v1213
    %1563 = vmatpush.bf16.msra.mxu0 %v1212
    %1564 = vmatpush.bf16.msra.mxu0 %v1211
    %1565 = vmatpush.bf16.msra.mxu0 %v1210
    %1566 = vmatpush.bf16.msra.mxu0 %v1209
    %1567 = vmatpush.bf16.msra.mxu0 %v1208
    %1568 = vmatmul.bf16.gmra.mxu0 %v515
    %v1569 = vpop.f32.mrf.mxu0
    %v1570 = vadd.f32 %v1556, %v1569
    %v1571 = vpop.f32.mrf.mxu0
    %v1572 = vadd.f32 %v1558, %v1571
    %1573 = vdwg.mxu0
    %1574 = vmatpush.bf16.msra.mxu0 %v1223
    %1575 = vmatpush.bf16.msra.mxu0 %v1222
    %1576 = vmatpush.bf16.msra.mxu0 %v1221
    %1577 = vmatpush.bf16.msra.mxu0 %v1220
    %1578 = vmatpush.bf16.msra.mxu0 %v1219
    %1579 = vmatpush.bf16.msra.mxu0 %v1218
    %1580 = vmatpush.bf16.msra.mxu0 %v1217
    %1581 = vmatpush.bf16.msra.mxu0 %v1216
    %1582 = vmatmul.bf16.gmra.mxu0 %v516
    %v1583 = vpop.f32.mrf.mxu0
    %v1584 = vadd.f32 %v1570, %v1583
    %v1585 = vpop.f32.mrf.mxu0
    %v1586 = vadd.f32 %v1572, %v1585
    %1587 = vdwg.mxu0
    %1588 = vmatpush.bf16.msra.mxu0 %v1231
    %1589 = vmatpush.bf16.msra.mxu0 %v1230
    %1590 = vmatpush.bf16.msra.mxu0 %v1229
    %1591 = vmatpush.bf16.msra.mxu0 %v1228
    %1592 = vmatpush.bf16.msra.mxu0 %v1227
    %1593 = vmatpush.bf16.msra.mxu0 %v1226
    %1594 = vmatpush.bf16.msra.mxu0 %v1225
    %1595 = vmatpush.bf16.msra.mxu0 %v1224
    %1596 = vmatmul.bf16.gmra.mxu0 %v517
    %v1597 = vpop.f32.mrf.mxu0
    %v1598 = vadd.f32 %v1584, %v1597
    %v1599 = vpop.f32.mrf.mxu0
    %v1600 = vadd.f32 %v1586, %v1599
    %1601 = vdwg.mxu0
    %1602 = vmatpush.bf16.msra.mxu0 %v1239
    %1603 = vmatpush.bf16.msra.mxu0 %v1238
    %1604 = vmatpush.bf16.msra.mxu0 %v1237
    %1605 = vmatpush.bf16.msra.mxu0 %v1236
    %1606 = vmatpush.bf16.msra.mxu0 %v1235
    %1607 = vmatpush.bf16.msra.mxu0 %v1234
    %1608 = vmatpush.bf16.msra.mxu0 %v1233
    %1609 = vmatpush.bf16.msra.mxu0 %v1232
    %1610 = vmatmul.bf16.gmra.mxu0 %v518
    %v1611 = vpop.f32.mrf.mxu0
    %v1612 = vadd.f32 %v1598, %v1611
    %v1613 = vpop.f32.mrf.mxu0
    %v1614 = vadd.f32 %v1600, %v1613
    %1615 = vdwg.mxu0
    %1616 = vmatpush.bf16.msra.mxu0 %v1247
    %1617 = vmatpush.bf16.msra.mxu0 %v1246
    %1618 = vmatpush.bf16.msra.mxu0 %v1245
    %1619 = vmatpush.bf16.msra.mxu0 %v1244
    %1620 = vmatpush.bf16.msra.mxu0 %v1243
    %1621 = vmatpush.bf16.msra.mxu0 %v1242
    %1622 = vmatpush.bf16.msra.mxu0 %v1241
    %1623 = vmatpush.bf16.msra.mxu0 %v1240
    %1624 = vmatmul.bf16.gmra.mxu0 %v519
    %v1625 = vpop.f32.mrf.mxu0
    %v1626 = vadd.f32 %v1612, %v1625
    %v1627 = vpop.f32.mrf.mxu0
    %v1628 = vadd.f32 %v1614, %v1627
    %1629 = vdwg.mxu0
    %1630 = vmatpush.bf16.msra.mxu0 %v1255
    %1631 = vmatpush.bf16.msra.mxu0 %v1254
    %1632 = vmatpush.bf16.msra.mxu0 %v1253
    %1633 = vmatpush.bf16.msra.mxu0 %v1252
    %1634 = vmatpush.bf16.msra.mxu0 %v1251
    %1635 = vmatpush.bf16.msra.mxu0 %v1250
    %1636 = vmatpush.bf16.msra.mxu0 %v1249
    %1637 = vmatpush.bf16.msra.mxu0 %v1248
    %1638 = vmatmul.bf16.gmra.mxu0 %v520
    %v1639 = vpop.f32.mrf.mxu0
    %v1640 = vadd.f32 %v1626, %v1639
    %v1641 = vpop.f32.mrf.mxu0
    %v1642 = vadd.f32 %v1628, %v1641
    %1643 = vdwg.mxu0
    %1644 = vmatpush.bf16.msra.mxu0 %v1263
    %1645 = vmatpush.bf16.msra.mxu0 %v1262
    %1646 = vmatpush.bf16.msra.mxu0 %v1261
    %1647 = vmatpush.bf16.msra.mxu0 %v1260
    %1648 = vmatpush.bf16.msra.mxu0 %v1259
    %1649 = vmatpush.bf16.msra.mxu0 %v1258
    %1650 = vmatpush.bf16.msra.mxu0 %v1257
    %1651 = vmatpush.bf16.msra.mxu0 %v1256
    %1652 = vmatmul.bf16.gmra.mxu0 %v521
    %v1653 = vpop.f32.mrf.mxu0
    %v1654 = vadd.f32 %v1640, %v1653
    %v1655 = vpop.f32.mrf.mxu0
    %v1656 = vadd.f32 %v1642, %v1655
    %1657 = vdwg.mxu0
    %1658 = vmatpush.bf16.msra.mxu0 %v1271
    %1659 = vmatpush.bf16.msra.mxu0 %v1270
    %1660 = vmatpush.bf16.msra.mxu0 %v1269
    %1661 = vmatpush.bf16.msra.mxu0 %v1268
    %1662 = vmatpush.bf16.msra.mxu0 %v1267
    %1663 = vmatpush.bf16.msra.mxu0 %v1266
    %1664 = vmatpush.bf16.msra.mxu0 %v1265
    %1665 = vmatpush.bf16.msra.mxu0 %v1264
    %1666 = vmatmul.bf16.gmra.mxu0 %v522
    %v1667 = vpop.f32.mrf.mxu0
    %v1668 = vadd.f32 %v1654, %v1667
    %v1669 = vpop.f32.mrf.mxu0
    %v1670 = vadd.f32 %v1656, %v1669
    %1671 = vdwg.mxu0
    %1672 = vmatpush.bf16.msra.mxu0 %v1279
    %1673 = vmatpush.bf16.msra.mxu0 %v1278
    %1674 = vmatpush.bf16.msra.mxu0 %v1277
    %1675 = vmatpush.bf16.msra.mxu0 %v1276
    %1676 = vmatpush.bf16.msra.mxu0 %v1275
    %1677 = vmatpush.bf16.msra.mxu0 %v1274
    %1678 = vmatpush.bf16.msra.mxu0 %v1273
    %1679 = vmatpush.bf16.msra.mxu0 %v1272
    %1680 = vmatmul.bf16.gmra.mxu0 %v523
    %v1681 = vpop.f32.mrf.mxu0
    %v1682 = vadd.f32 %v1668, %v1681
    %v1683 = vpop.f32.mrf.mxu0
    %v1684 = vadd.f32 %v1670, %v1683
    %1685 = vdwg.mxu0
    %1686 = vmatpush.bf16.msra.mxu0 %v1287
    %1687 = vmatpush.bf16.msra.mxu0 %v1286
    %1688 = vmatpush.bf16.msra.mxu0 %v1285
    %1689 = vmatpush.bf16.msra.mxu0 %v1284
    %1690 = vmatpush.bf16.msra.mxu0 %v1283
    %1691 = vmatpush.bf16.msra.mxu0 %v1282
    %1692 = vmatpush.bf16.msra.mxu0 %v1281
    %1693 = vmatpush.bf16.msra.mxu0 %v1280
    %1694 = vmatmul.bf16.gmra.mxu0 %v524
    %v1695 = vpop.f32.mrf.mxu0
    %v1696 = vadd.f32 %v1682, %v1695
    %v1697 = vpop.f32.mrf.mxu0
    %v1698 = vadd.f32 %v1684, %v1697
    %1699 = vdwg.mxu0
    %1700 = vmatpush.bf16.msra.mxu0 0
    %1701 = vmatpush.bf16.msra.mxu0 0
    %1702 = vmatpush.bf16.msra.mxu0 %v1293
    %1703 = vmatpush.bf16.msra.mxu0 %v1292
    %1704 = vmatpush.bf16.msra.mxu0 %v1291
    %1705 = vmatpush.bf16.msra.mxu0 %v1290
    %1706 = vmatpush.bf16.msra.mxu0 %v1289
    %1707 = vmatpush.bf16.msra.mxu0 %v1288
    %1708 = vmatmul.bf16.gmra.mxu0 %v1446
    %v1709 = vpop.f32.mrf.mxu0
    %v1710 = vadd.f32 %v1696, %v1709
    %v1711 = vpop.f32.mrf.mxu0
    %v1712 = vadd.f32 %v1698, %v1711
    %1713 = vdwg.mxu0
    %v1714 = vmax.f32 %v1710, 0.0
    %v1715 = vmax.f32 %v1712, 0.0
    %v1716 = vld [vmem:[#allocation5] sm:$0xff]
    %v1717 = vld [vmem:[#allocation5 + $0x8] sm:$0xff]
    %v1718 = vld [vmem:[#allocation5 + $0x10] sm:$0xff]
    %v1719 = vld [vmem:[#allocation5 + $0x18] sm:$0xff]
    %v1720 = vld [vmem:[#allocation5 + $0x20] sm:$0xff]
    %v1721 = vld [vmem:[#allocation5 + $0x28] sm:$0xff]
    %v1722 = vld [vmem:[#allocation5 + $0x30] sm:$0xff]
    %v1723 = vld [vmem:[#allocation5 + $0x38] sm:$0xff]
    %v1724 = vld [vmem:[#allocation5 + $0x40] sm:$0xff]
    %v1725 = vld [vmem:[#allocation5 + $0x48] sm:$0xff]
    %v1726 = vld [vmem:[#allocation5 + $0x50] sm:$0xff]
    %v1727 = vld [vmem:[#allocation5 + $0x58] sm:$0xff]
    %v1728 = vld [vmem:[#allocation5 + $0x60] sm:$0xff]
    %v1729 = vld [vmem:[#allocation5 + $0x68] sm:$0xff]
    %v1730 = vld [vmem:[#allocation5 + $0x70] sm:$0xff]
    %v1731 = vld [vmem:[#allocation5 + $0x78] sm:$0xff]
    %v1732 = vld [vmem:[#allocation8] sm:$0xf]
    %v1733 = vld [vmem:[#allocation8 + $0x4] sm:$0xf]
    %v1734 = vld [vmem:[#allocation8 + $0x8] sm:$0xf]
    %v1735 = vld [vmem:[#allocation8 + $0xc] sm:$0xf]
    %v1736 = vld [vmem:[#allocation8 + $0x10] sm:$0xf]
    %v1737 = vld [vmem:[#allocation8 + $0x14] sm:$0xf]
    %v1738 = vld [vmem:[#allocation8 + $0x18] sm:$0xf]
    %v1739 = vld [vmem:[#allocation8 + $0x1c] sm:$0xf]
    %v1740 = vld [vmem:[#allocation8 + $0x20] sm:$0xf]
    %v1741 = vld [vmem:[#allocation8 + $0x24] sm:$0xf]
    %v1742 = vld [vmem:[#allocation8 + $0x28] sm:$0xf]
    %v1743 = vld [vmem:[#allocation8 + $0x2c] sm:$0xf]
    %v1744 = vld [vmem:[#allocation8 + $0x30] sm:$0xf]
    %v1745 = vld [vmem:[#allocation8 + $0x34] sm:$0xf]
    %v1746 = vld [vmem:[#allocation8 + $0x38] sm:$0xf]
    %v1747 = vld [vmem:[#allocation8 + $0x3c] sm:$0xf]
    %v1748 = vld [vmem:[#allocation8 + $0x40] sm:$0xf]
    %v1749 = vld [vmem:[#allocation8 + $0x44] sm:$0xf]
    %v1750 = vld [vmem:[#allocation8 + $0x48] sm:$0xf]
    %v1751 = vld [vmem:[#allocation8 + $0x4c] sm:$0xf]
    %v1752 = vld [vmem:[#allocation8 + $0x50] sm:$0xf]
    %v1753 = vld [vmem:[#allocation8 + $0x54] sm:$0xf]
    %v1754 = vld [vmem:[#allocation8 + $0x58] sm:$0xf]
    %v1755 = vld [vmem:[#allocation8 + $0x5c] sm:$0xf]
    %v1756 = vld [vmem:[#allocation8 + $0x60] sm:$0xf]
    %v1757 = vld [vmem:[#allocation8 + $0x64] sm:$0xf]
    %v1758 = vld [vmem:[#allocation8 + $0x68] sm:$0xf]
    %v1759 = vld [vmem:[#allocation8 + $0x6c] sm:$0xf]
    %v1760 = vld [vmem:[#allocation8 + $0x70] sm:$0xf]
    %v1761 = vld [vmem:[#allocation8 + $0x74] sm:$0xf]
    %v1762 = vld [vmem:[#allocation8 + $0x78] sm:$0xf]
    %v1763 = vld [vmem:[#allocation8 + $0x7c] sm:$0xf]
    %v1764 = vld [vmem:[#allocation8 + $0x80] sm:$0xf]
    %v1765 = vld [vmem:[#allocation8 + $0x84] sm:$0xf]
    %v1766 = vld [vmem:[#allocation8 + $0x88] sm:$0xf]
    %v1767 = vld [vmem:[#allocation8 + $0x8c] sm:$0xf]
    %v1768 = vld [vmem:[#allocation8 + $0x90] sm:$0xf]
    %v1769 = vld [vmem:[#allocation8 + $0x94] sm:$0xf]
    %v1770 = vld [vmem:[#allocation8 + $0x98] sm:$0xf]
    %v1771 = vld [vmem:[#allocation8 + $0x9c] sm:$0xf]
    %v1772 = vld [vmem:[#allocation8 + $0xa0] sm:$0xf]
    %v1773 = vld [vmem:[#allocation8 + $0xa4] sm:$0xf]
    %v1774 = vld [vmem:[#allocation8 + $0xa8] sm:$0xf]
    %v1775 = vld [vmem:[#allocation8 + $0xac] sm:$0xf]
    %v1776 = vld [vmem:[#allocation8 + $0xb0] sm:$0xf]
    %v1777 = vld [vmem:[#allocation8 + $0xb4] sm:$0xf]
    %v1778 = vld [vmem:[#allocation8 + $0xb8] sm:$0xf]
    %v1779 = vld [vmem:[#allocation8 + $0xbc] sm:$0xf]
    %v1780 = vld [vmem:[#allocation8 + $0xc0] sm:$0xf]
    %v1781 = vld [vmem:[#allocation8 + $0xc4] sm:$0xf]
    %v1782 = vld [vmem:[#allocation8 + $0xc8] sm:$0xf]
    %v1783 = vld [vmem:[#allocation8 + $0xcc] sm:$0xf]
    %v1784 = vld [vmem:[#allocation8 + $0xd0] sm:$0xf]
    %v1785 = vld [vmem:[#allocation8 + $0xd4] sm:$0xf]
    %v1786 = vld [vmem:[#allocation8 + $0xd8] sm:$0xf]
    %v1787 = vld [vmem:[#allocation8 + $0xdc] sm:$0xf]
    %v1788 = vld [vmem:[#allocation8 + $0xe0] sm:$0xf]
    %v1789 = vld [vmem:[#allocation8 + $0xe4] sm:$0xf]
    %v1790 = vld [vmem:[#allocation8 + $0xe8] sm:$0xf]
    %v1791 = vld [vmem:[#allocation8 + $0xec] sm:$0xf]
    %v1792 = vld [vmem:[#allocation8 + $0xf0] sm:$0xf]
    %v1793 = vld [vmem:[#allocation8 + $0xf4] sm:$0xf]
    %v1794 = vld [vmem:[#allocation8 + $0xf8] sm:$0xf]
    %v1795 = vld [vmem:[#allocation8 + $0xfc] sm:$0xf]
    %v1796 = vld [vmem:[#allocation8 + $0x100] sm:$0xf]
    %v1797 = vld [vmem:[#allocation8 + $0x104] sm:$0xf]
    %v1798 = vld [vmem:[#allocation8 + $0x108] sm:$0xf]
    %v1799 = vld [vmem:[#allocation8 + $0x10c] sm:$0xf]
    %v1800 = vld [vmem:[#allocation8 + $0x110] sm:$0xf]
    %v1801 = vld [vmem:[#allocation8 + $0x114] sm:$0xf]
    %v1802 = vld [vmem:[#allocation8 + $0x118] sm:$0xf]
    %v1803 = vld [vmem:[#allocation8 + $0x11c] sm:$0xf]
    %v1804 = vld [vmem:[#allocation8 + $0x120] sm:$0xf]
    %v1805 = vld [vmem:[#allocation8 + $0x124] sm:$0xf]
    %v1806 = vld [vmem:[#allocation8 + $0x128] sm:$0xf]
    %v1807 = vld [vmem:[#allocation8 + $0x12c] sm:$0xf]
    %v1808 = vld [vmem:[#allocation8 + $0x130] sm:$0xf]
    %v1809 = vld [vmem:[#allocation8 + $0x134] sm:$0xf]
    %v1810 = vld [vmem:[#allocation8 + $0x138] sm:$0xf]
    %v1811 = vld [vmem:[#allocation8 + $0x13c] sm:$0xf]
    %v1812 = vld [vmem:[#allocation8 + $0x140] sm:$0xf]
    %v1813 = vld [vmem:[#allocation8 + $0x144] sm:$0xf]
    %v1814 = vld [vmem:[#allocation8 + $0x148] sm:$0xf]
    %v1815 = vld [vmem:[#allocation8 + $0x14c] sm:$0xf]
    %v1816 = vld [vmem:[#allocation8 + $0x150] sm:$0xf]
    %v1817 = vld [vmem:[#allocation8 + $0x154] sm:$0xf]
    %v1818 = vld [vmem:[#allocation8 + $0x158] sm:$0xf]
    %v1819 = vld [vmem:[#allocation8 + $0x15c] sm:$0xf]
    %v1820 = vld [vmem:[#allocation8 + $0x160] sm:$0xf]
    %v1821 = vld [vmem:[#allocation8 + $0x164] sm:$0xf]
    %v1822 = vld [vmem:[#allocation8 + $0x168] sm:$0xf]
    %v1823 = vld [vmem:[#allocation8 + $0x16c] sm:$0xf]
    %v1824 = vld [vmem:[#allocation8 + $0x170] sm:$0xf]
    %v1825 = vld [vmem:[#allocation8 + $0x174] sm:$0xf]
    %v1826 = vld [vmem:[#allocation8 + $0x178] sm:$0xf]
    %v1827 = vld [vmem:[#allocation8 + $0x17c] sm:$0xf]
    %v1828 = vld [vmem:[#allocation8 + $0x180] sm:$0xf]
    %v1829 = vld [vmem:[#allocation8 + $0x184] sm:$0xf]
    %v1830 = vld [vmem:[#allocation8 + $0x188] sm:$0xf]
    %v1831 = vld [vmem:[#allocation8 + $0x18c] sm:$0xf]
    %v1832 = vld [vmem:[#allocation8 + $0x190] sm:$0xf]
    %v1833 = vld [vmem:[#allocation8 + $0x194] sm:$0xf]
    %v1834 = vld [vmem:[#allocation8 + $0x198] sm:$0xf]
    %v1835 = vld [vmem:[#allocation8 + $0x19c] sm:$0xf]
    %v1836 = vld [vmem:[#allocation8 + $0x1a0] sm:$0xf]
    %v1837 = vld [vmem:[#allocation8 + $0x1a4] sm:$0xf]
    %v1838 = vld [vmem:[#allocation8 + $0x1a8] sm:$0xf]
    %v1839 = vld [vmem:[#allocation8 + $0x1ac] sm:$0xf]
    %v1840 = vld [vmem:[#allocation8 + $0x1b0] sm:$0xf]
    %v1841 = vld [vmem:[#allocation8 + $0x1b4] sm:$0xf]
    %v1842 = vld [vmem:[#allocation8 + $0x1b8] sm:$0xf]
    %v1843 = vld [vmem:[#allocation8 + $0x1bc] sm:$0xf]
    %v1844 = vld [vmem:[#allocation8 + $0x1c0] sm:$0xf]
    %v1845 = vld [vmem:[#allocation8 + $0x1c4] sm:$0xf]
    %v1846 = vld [vmem:[#allocation8 + $0x1c8] sm:$0xf]
    %v1847 = vld [vmem:[#allocation8 + $0x1cc] sm:$0xf]
    %v1848 = vld [vmem:[#allocation8 + $0x1d0] sm:$0xf]
    %v1849 = vld [vmem:[#allocation8 + $0x1d4] sm:$0xf]
    %v1850 = vld [vmem:[#allocation8 + $0x1d8] sm:$0xf]
    %v1851 = vld [vmem:[#allocation8 + $0x1dc] sm:$0xf]
    %v1852 = vld [vmem:[#allocation8 + $0x1e0] sm:$0xf]
    %v1853 = vld [vmem:[#allocation8 + $0x1e4] sm:$0xf]
    %v1854 = vld [vmem:[#allocation8 + $0x1e8] sm:$0xf]
    %v1855 = vld [vmem:[#allocation8 + $0x1ec] sm:$0xf]
    %v1856 = vld [vmem:[#allocation8 + $0x1f0] sm:$0xf]
    %v1857 = vld [vmem:[#allocation8 + $0x1f4] sm:$0xf]
    %v1858 = vld [vmem:[#allocation8 + $0x1f8] sm:$0xf]
    %v1859 = vld [vmem:[#allocation8 + $0x1fc] sm:$0xf]
    %v1860 = vld [vmem:[#allocation8 + $0x200] sm:$0xf]
    %v1861 = vld [vmem:[#allocation8 + $0x204] sm:$0xf]
    %v1862 = vld [vmem:[#allocation8 + $0x208] sm:$0xf]
    %v1863 = vld [vmem:[#allocation8 + $0x20c] sm:$0xf]
    %v1864 = vld [vmem:[#allocation8 + $0x210] sm:$0xf]
    %v1865 = vld [vmem:[#allocation8 + $0x214] sm:$0xf]
    %v1866 = vld [vmem:[#allocation8 + $0x218] sm:$0xf]
    %v1867 = vld [vmem:[#allocation8 + $0x21c] sm:$0xf]
    %v1868 = vld [vmem:[#allocation8 + $0x220] sm:$0xf]
    %v1869 = vld [vmem:[#allocation8 + $0x224] sm:$0xf]
    %v1870 = vld [vmem:[#allocation8 + $0x228] sm:$0xf]
    %v1871 = vld [vmem:[#allocation8 + $0x22c] sm:$0xf]
    %v1872 = vld [vmem:[#allocation8 + $0x230] sm:$0xf]
    %v1873 = vld [vmem:[#allocation8 + $0x234] sm:$0xf]
    %v1874 = vld [vmem:[#allocation8 + $0x238] sm:$0xf]
    %v1875 = vld [vmem:[#allocation8 + $0x23c] sm:$0xf]
    %v1876 = vld [vmem:[#allocation8 + $0x240] sm:$0xf]
    %v1877 = vld [vmem:[#allocation8 + $0x244] sm:$0xf]
    %v1878 = vld [vmem:[#allocation8 + $0x248] sm:$0xf]
    %v1879 = vld [vmem:[#allocation8 + $0x24c] sm:$0xf]
    %v1880 = vld [vmem:[#allocation8 + $0x250] sm:$0xf]
    %v1881 = vld [vmem:[#allocation8 + $0x254] sm:$0xf]
    %v1882 = vld [vmem:[#allocation8 + $0x258] sm:$0xf]
    %v1883 = vld [vmem:[#allocation8 + $0x25c] sm:$0xf]
    %v1884 = vld [vmem:[#allocation8 + $0x260] sm:$0xf]
    %v1885 = vld [vmem:[#allocation8 + $0x264] sm:$0xf]
    %v1886 = vld [vmem:[#allocation8 + $0x268] sm:$0xf]
    %v1887 = vld [vmem:[#allocation8 + $0x26c] sm:$0xf]
    %v1888 = vld [vmem:[#allocation8 + $0x270] sm:$0xf]
    %v1889 = vld [vmem:[#allocation8 + $0x274] sm:$0xf]
    %v1890 = vld [vmem:[#allocation8 + $0x278] sm:$0xf]
    %v1891 = vld [vmem:[#allocation8 + $0x27c] sm:$0xf]
    %v1892 = vld [vmem:[#allocation8 + $0x280] sm:$0xf]
    %v1893 = vld [vmem:[#allocation8 + $0x284] sm:$0xf]
    %v1894 = vld [vmem:[#allocation8 + $0x288] sm:$0xf]
    %v1895 = vld [vmem:[#allocation8 + $0x28c] sm:$0xf]
    %v1896 = vld [vmem:[#allocation8 + $0x290] sm:$0xf]
    %v1897 = vld [vmem:[#allocation8 + $0x294] sm:$0xf]
    %v1898 = vld [vmem:[#allocation8 + $0x298] sm:$0xf]
    %v1899 = vld [vmem:[#allocation8 + $0x29c] sm:$0xf]
    %v1900 = vld [vmem:[#allocation8 + $0x2a0] sm:$0xf]
    %v1901 = vld [vmem:[#allocation8 + $0x2a4] sm:$0xf]
    %v1902 = vld [vmem:[#allocation8 + $0x2a8] sm:$0xf]
    %v1903 = vld [vmem:[#allocation8 + $0x2ac] sm:$0xf]
    %v1904 = vld [vmem:[#allocation8 + $0x2b0] sm:$0xf]
    %v1905 = vld [vmem:[#allocation8 + $0x2b4] sm:$0xf]
    %v1906 = vld [vmem:[#allocation8 + $0x2b8] sm:$0xf]
    %v1907 = vld [vmem:[#allocation8 + $0x2bc] sm:$0xf]
    %v1908 = vld [vmem:[#allocation8 + $0x2c0] sm:$0xf]
    %v1909 = vld [vmem:[#allocation8 + $0x2c4] sm:$0xf]
    %v1910 = vld [vmem:[#allocation8 + $0x2c8] sm:$0xf]
    %v1911 = vld [vmem:[#allocation8 + $0x2cc] sm:$0xf]
    %v1912 = vld [vmem:[#allocation8 + $0x2d0] sm:$0xf]
    %v1913 = vld [vmem:[#allocation8 + $0x2d4] sm:$0xf]
    %v1914 = vld [vmem:[#allocation8 + $0x2d8] sm:$0xf]
    %v1915 = vld [vmem:[#allocation8 + $0x2dc] sm:$0xf]
    %v1916 = vld [vmem:[#allocation8 + $0x2e0] sm:$0xf]
    %v1917 = vld [vmem:[#allocation8 + $0x2e4] sm:$0xf]
    %v1918 = vld [vmem:[#allocation8 + $0x2e8] sm:$0xf]
    %v1919 = vld [vmem:[#allocation8 + $0x2ec] sm:$0xf]
    %v1920 = vld [vmem:[#allocation8 + $0x2f0] sm:$0xf]
    %v1921 = vld [vmem:[#allocation8 + $0x2f4] sm:$0xf]
    %v1922 = vld [vmem:[#allocation8 + $0x2f8] sm:$0xf]
    %v1923 = vld [vmem:[#allocation8 + $0x2fc] sm:$0xf]
    %v1924 = vld [vmem:[#allocation8 + $0x300] sm:$0xf]
    %v1925 = vld [vmem:[#allocation8 + $0x304] sm:$0xf]
    %v1926 = vld [vmem:[#allocation8 + $0x308] sm:$0xf]
    %v1927 = vld [vmem:[#allocation8 + $0x30c] sm:$0xf]
    %v1928 = vld [vmem:[#allocation8 + $0x310] sm:$0xf]
    %v1929 = vld [vmem:[#allocation8 + $0x314] sm:$0xf]
    %v1930 = vld [vmem:[#allocation8 + $0x318] sm:$0xf]
    %v1931 = vld [vmem:[#allocation8 + $0x31c] sm:$0xf]
    %v1932 = vld [vmem:[#allocation8 + $0x320] sm:$0xf]
    %v1933 = vld [vmem:[#allocation8 + $0x324] sm:$0xf]
    %v1934 = vld [vmem:[#allocation8 + $0x328] sm:$0xf]
    %v1935 = vld [vmem:[#allocation8 + $0x32c] sm:$0xf]
    %v1936 = vld [vmem:[#allocation8 + $0x330] sm:$0xf]
    %v1937 = vld [vmem:[#allocation8 + $0x334] sm:$0xf]
    %v1938 = vld [vmem:[#allocation8 + $0x338] sm:$0xf]
    %v1939 = vld [vmem:[#allocation8 + $0x33c] sm:$0xf]
    %v1940 = vld [vmem:[#allocation8 + $0x340] sm:$0xf]
    %v1941 = vld [vmem:[#allocation8 + $0x344] sm:$0xf]
    %v1942 = vld [vmem:[#allocation8 + $0x348] sm:$0xf]
    %v1943 = vld [vmem:[#allocation8 + $0x34c] sm:$0xf]
    %v1944 = vld [vmem:[#allocation8 + $0x350] sm:$0xf]
    %v1945 = vld [vmem:[#allocation8 + $0x354] sm:$0xf]
    %v1946 = vld [vmem:[#allocation8 + $0x358] sm:$0xf]
    %v1947 = vld [vmem:[#allocation8 + $0x35c] sm:$0xf]
    %v1948 = vld [vmem:[#allocation8 + $0x360] sm:$0xf]
    %v1949 = vld [vmem:[#allocation8 + $0x364] sm:$0xf]
    %v1950 = vld [vmem:[#allocation8 + $0x368] sm:$0xf]
    %v1951 = vld [vmem:[#allocation8 + $0x36c] sm:$0xf]
    %v1952 = vld [vmem:[#allocation8 + $0x370] sm:$0xf]
    %v1953 = vld [vmem:[#allocation8 + $0x374] sm:$0xf]
    %v1954 = vld [vmem:[#allocation8 + $0x378] sm:$0xf]
    %v1955 = vld [vmem:[#allocation8 + $0x37c] sm:$0xf]
    %v1956 = vld [vmem:[#allocation8 + $0x380] sm:$0xf]
    %v1957 = vld [vmem:[#allocation8 + $0x384] sm:$0xf]
    %v1958 = vld [vmem:[#allocation8 + $0x388] sm:$0xf]
    %v1959 = vld [vmem:[#allocation8 + $0x38c] sm:$0xf]
    %v1960 = vld [vmem:[#allocation8 + $0x390] sm:$0xf]
    %v1961 = vld [vmem:[#allocation8 + $0x394] sm:$0xf]
    %v1962 = vld [vmem:[#allocation8 + $0x398] sm:$0xf]
    %v1963 = vld [vmem:[#allocation8 + $0x39c] sm:$0xf]
    %v1964 = vld [vmem:[#allocation8 + $0x3a0] sm:$0xf]
    %v1965 = vld [vmem:[#allocation8 + $0x3a4] sm:$0xf]
    %v1966 = vld [vmem:[#allocation8 + $0x3a8] sm:$0xf]
    %v1967 = vld [vmem:[#allocation8 + $0x3ac] sm:$0xf]
    %v1968 = vld [vmem:[#allocation8 + $0x3b0] sm:$0xf]
    %v1969 = vld [vmem:[#allocation8 + $0x3b4] sm:$0xf]
    %v1970 = vld [vmem:[#allocation8 + $0x3b8] sm:$0xf]
    %v1971 = vld [vmem:[#allocation8 + $0x3bc] sm:$0xf]
    %v1972 = vld [vmem:[#allocation8 + $0x3c0] sm:$0xf]
    %v1973 = vld [vmem:[#allocation8 + $0x3c4] sm:$0xf]
    %v1974 = vld [vmem:[#allocation8 + $0x3c8] sm:$0xf]
    %v1975 = vld [vmem:[#allocation8 + $0x3cc] sm:$0xf]
    %v1976 = vld [vmem:[#allocation8 + $0x3d0] sm:$0xf]
    %v1977 = vld [vmem:[#allocation8 + $0x3d4] sm:$0xf]
    %v1978 = vld [vmem:[#allocation8 + $0x3d8] sm:$0xf]
    %v1979 = vld [vmem:[#allocation8 + $0x3dc] sm:$0xf]
    %v1980 = vld [vmem:[#allocation8 + $0x3e0] sm:$0xf]
    %v1981 = vld [vmem:[#allocation8 + $0x3e4] sm:$0xf]
    %v1982 = vld [vmem:[%s5] sm:$0x1]
    %v1984 = vperm.slane %v1982, 0
    %v2002 = vunpack.c.l.b16 %v1716
    %v2003 = vunpack.c.h.b16 %v1716
    %v2004 = vunpack.c.l.b16 %v1717
    %v2005 = vunpack.c.h.b16 %v1717
    %v2006 = vunpack.c.l.b16 %v1718
    %v2007 = vunpack.c.h.b16 %v1718
    %v2008 = vunpack.c.l.b16 %v1719
    %v2009 = vunpack.c.h.b16 %v1719
    %v2010 = vunpack.c.l.b16 %v1720
    %v2011 = vunpack.c.h.b16 %v1720
    %v2012 = vunpack.c.l.b16 %v1721
    %v2013 = vunpack.c.h.b16 %v1721
    %v2014 = vunpack.c.l.b16 %v1722
    %v2015 = vunpack.c.h.b16 %v1722
    %v2016 = vunpack.c.l.b16 %v1723
    %v2017 = vunpack.c.h.b16 %v1723
    %v2018 = vunpack.c.l.b16 %v1724
    %v2019 = vunpack.c.h.b16 %v1724
    %v2020 = vunpack.c.l.b16 %v1725
    %v2021 = vunpack.c.h.b16 %v1725
    %v2022 = vunpack.c.l.b16 %v1726
    %v2023 = vunpack.c.h.b16 %v1726
    %v2024 = vunpack.c.l.b16 %v1727
    %v2025 = vunpack.c.h.b16 %v1727
    %v2026 = vunpack.c.l.b16 %v1728
    %v2027 = vunpack.c.h.b16 %v1728
    %v2028 = vunpack.c.l.b16 %v1729
    %v2029 = vunpack.c.h.b16 %v1729
    %v2030 = vunpack.c.l.b16 %v1730
    %v2031 = vunpack.c.h.b16 %v1730
    %v2032 = vunpack.c.l.b16 %v1731
    %v2033 = vunpack.c.h.b16 %v1731
    %v2034 = vpack.c.b16 %v2018, %v2002
    %v2035 = vpack.c.b16 %v2019, %v2003
    %v2036 = vpack.c.b16 %v2020, %v2004
    %v2037 = vpack.c.b16 %v2021, %v2005
    %v2038 = vpack.c.b16 %v2022, %v2006
    %v2039 = vpack.c.b16 %v2023, %v2007
    %v2040 = vpack.c.b16 %v2024, %v2008
    %v2041 = vpack.c.b16 %v2025, %v2009
    %v2042 = vpack.c.b16 %v2026, %v2010
    %v2043 = vpack.c.b16 %v2027, %v2011
    %v2044 = vpack.c.b16 %v2028, %v2012
    %v2045 = vpack.c.b16 %v2029, %v2013
    %v2046 = vpack.c.b16 %v2030, %v2014
    %v2047 = vpack.c.b16 %v2031, %v2015
    %v2048 = vpack.c.b16 %v2032, %v2016
    %v2049 = vpack.c.b16 %v2033, %v2017
    %v2315 = vunpack.c.l.b16 %v1732
    %v2316 = vunpack.c.l.b16 %v1733
    %v2317 = vunpack.c.l.b16 %v1734
    %v2318 = vunpack.c.l.b16 %v1735
    %v2319 = vunpack.c.l.b16 %v1736
    %v2320 = vunpack.c.l.b16 %v1737
    %v2321 = vunpack.c.l.b16 %v1738
    %v2322 = vunpack.c.l.b16 %v1739
    %v2323 = vunpack.c.l.b16 %v1740
    %v2324 = vunpack.c.l.b16 %v1741
    %v2325 = vunpack.c.l.b16 %v1742
    %v2326 = vunpack.c.l.b16 %v1743
    %v2327 = vunpack.c.l.b16 %v1744
    %v2328 = vunpack.c.l.b16 %v1745
    %v2329 = vunpack.c.l.b16 %v1746
    %v2330 = vunpack.c.l.b16 %v1747
    %v2331 = vunpack.c.l.b16 %v1748
    %v2332 = vunpack.c.l.b16 %v1749
    %v2333 = vunpack.c.l.b16 %v1750
    %v2334 = vunpack.c.l.b16 %v1751
    %v2335 = vunpack.c.l.b16 %v1752
    %v2336 = vunpack.c.l.b16 %v1753
    %v2337 = vunpack.c.l.b16 %v1754
    %v2338 = vunpack.c.l.b16 %v1755
    %v2339 = vunpack.c.l.b16 %v1756
    %v2340 = vunpack.c.l.b16 %v1757
    %v2341 = vunpack.c.l.b16 %v1758
    %v2342 = vunpack.c.l.b16 %v1759
    %v2343 = vunpack.c.l.b16 %v1760
    %v2344 = vunpack.c.l.b16 %v1761
    %v2345 = vunpack.c.l.b16 %v1762
    %v2346 = vunpack.c.l.b16 %v1763
    %v2347 = vunpack.c.l.b16 %v1764
    %v2348 = vunpack.c.l.b16 %v1765
    %v2349 = vunpack.c.l.b16 %v1766
    %v2350 = vunpack.c.l.b16 %v1767
    %v2351 = vunpack.c.l.b16 %v1768
    %v2352 = vunpack.c.l.b16 %v1769
    %v2353 = vunpack.c.l.b16 %v1770
    %v2354 = vunpack.c.l.b16 %v1771
    %v2355 = vunpack.c.l.b16 %v1772
    %v2356 = vunpack.c.l.b16 %v1773
    %v2357 = vunpack.c.l.b16 %v1774
    %v2358 = vunpack.c.l.b16 %v1775
    %v2359 = vunpack.c.l.b16 %v1776
    %v2360 = vunpack.c.l.b16 %v1777
    %v2361 = vunpack.c.l.b16 %v1778
    %v2362 = vunpack.c.l.b16 %v1779
    %v2363 = vunpack.c.l.b16 %v1780
    %v2364 = vunpack.c.l.b16 %v1781
    %v2365 = vunpack.c.l.b16 %v1782
    %v2366 = vunpack.c.l.b16 %v1783
    %v2367 = vunpack.c.l.b16 %v1784
    %v2368 = vunpack.c.l.b16 %v1785
    %v2369 = vunpack.c.l.b16 %v1786
    %v2370 = vunpack.c.l.b16 %v1787
    %v2371 = vunpack.c.l.b16 %v1788
    %v2372 = vunpack.c.l.b16 %v1789
    %v2373 = vunpack.c.l.b16 %v1790
    %v2374 = vunpack.c.l.b16 %v1791
    %v2375 = vunpack.c.l.b16 %v1792
    %v2376 = vunpack.c.l.b16 %v1793
    %v2377 = vunpack.c.l.b16 %v1794
    %v2378 = vunpack.c.l.b16 %v1795
    %v2379 = vunpack.c.l.b16 %v1796
    %v2380 = vunpack.c.l.b16 %v1797
    %v2381 = vunpack.c.l.b16 %v1798
    %v2382 = vunpack.c.l.b16 %v1799
    %v2383 = vunpack.c.l.b16 %v1800
    %v2384 = vunpack.c.l.b16 %v1801
    %v2385 = vunpack.c.l.b16 %v1802
    %v2386 = vunpack.c.l.b16 %v1803
    %v2387 = vunpack.c.l.b16 %v1804
    %v2388 = vunpack.c.l.b16 %v1805
    %v2389 = vunpack.c.l.b16 %v1806
    %v2390 = vunpack.c.l.b16 %v1807
    %v2391 = vunpack.c.l.b16 %v1808
    %v2392 = vunpack.c.l.b16 %v1809
    %v2393 = vunpack.c.l.b16 %v1810
    %v2394 = vunpack.c.l.b16 %v1811
    %v2395 = vunpack.c.l.b16 %v1812
    %v2396 = vunpack.c.l.b16 %v1813
    %v2397 = vunpack.c.l.b16 %v1814
    %v2398 = vunpack.c.l.b16 %v1815
    %v2399 = vunpack.c.l.b16 %v1816
    %v2400 = vunpack.c.l.b16 %v1817
    %v2401 = vunpack.c.l.b16 %v1818
    %v2402 = vunpack.c.l.b16 %v1819
    %v2403 = vunpack.c.l.b16 %v1820
    %v2404 = vunpack.c.l.b16 %v1821
    %v2405 = vunpack.c.l.b16 %v1822
    %v2406 = vunpack.c.l.b16 %v1823
    %v2407 = vunpack.c.l.b16 %v1824
    %v2408 = vunpack.c.l.b16 %v1825
    %v2409 = vunpack.c.l.b16 %v1826
    %v2410 = vunpack.c.l.b16 %v1827
    %v2411 = vunpack.c.l.b16 %v1828
    %v2412 = vunpack.c.l.b16 %v1829
    %v2413 = vunpack.c.l.b16 %v1830
    %v2414 = vunpack.c.l.b16 %v1831
    %v2415 = vunpack.c.l.b16 %v1832
    %v2416 = vunpack.c.l.b16 %v1833
    %v2417 = vunpack.c.l.b16 %v1834
    %v2418 = vunpack.c.l.b16 %v1835
    %v2419 = vunpack.c.l.b16 %v1836
    %v2420 = vunpack.c.l.b16 %v1837
    %v2421 = vunpack.c.l.b16 %v1838
    %v2422 = vunpack.c.l.b16 %v1839
    %v2423 = vunpack.c.l.b16 %v1840
    %v2424 = vunpack.c.l.b16 %v1841
    %v2425 = vunpack.c.l.b16 %v1842
    %v2426 = vunpack.c.l.b16 %v1843
    %v2427 = vunpack.c.l.b16 %v1844
    %v2428 = vunpack.c.l.b16 %v1845
    %v2429 = vunpack.c.l.b16 %v1846
    %v2430 = vunpack.c.l.b16 %v1847
    %v2431 = vunpack.c.l.b16 %v1848
    %v2432 = vunpack.c.l.b16 %v1849
    %v2433 = vunpack.c.l.b16 %v1850
    %v2434 = vunpack.c.l.b16 %v1851
    %v2435 = vunpack.c.l.b16 %v1852
    %v2436 = vunpack.c.l.b16 %v1853
    %v2437 = vunpack.c.l.b16 %v1854
    %v2438 = vunpack.c.l.b16 %v1855
    %v2439 = vunpack.c.l.b16 %v1856
    %v2440 = vunpack.c.l.b16 %v1857
    %v2441 = vunpack.c.l.b16 %v1858
    %v2442 = vunpack.c.l.b16 %v1859
    %v2443 = vunpack.c.l.b16 %v1860
    %v2444 = vunpack.c.l.b16 %v1861
    %v2445 = vunpack.c.l.b16 %v1862
    %v2446 = vunpack.c.l.b16 %v1863
    %v2447 = vunpack.c.l.b16 %v1864
    %v2448 = vunpack.c.l.b16 %v1865
    %v2449 = vunpack.c.l.b16 %v1866
    %v2450 = vunpack.c.l.b16 %v1867
    %v2451 = vunpack.c.l.b16 %v1868
    %v2452 = vunpack.c.l.b16 %v1869
    %v2453 = vunpack.c.l.b16 %v1870
    %v2454 = vunpack.c.l.b16 %v1871
    %v2455 = vunpack.c.l.b16 %v1872
    %v2456 = vunpack.c.l.b16 %v1873
    %v2457 = vunpack.c.l.b16 %v1874
    %v2458 = vunpack.c.l.b16 %v1875
    %v2459 = vunpack.c.l.b16 %v1876
    %v2460 = vunpack.c.l.b16 %v1877
    %v2461 = vunpack.c.l.b16 %v1878
    %v2462 = vunpack.c.l.b16 %v1879
    %v2463 = vunpack.c.l.b16 %v1880
    %v2464 = vunpack.c.l.b16 %v1881
    %v2465 = vunpack.c.l.b16 %v1882
    %v2466 = vunpack.c.l.b16 %v1883
    %v2467 = vunpack.c.l.b16 %v1884
    %v2468 = vunpack.c.l.b16 %v1885
    %v2469 = vunpack.c.l.b16 %v1886
    %v2470 = vunpack.c.l.b16 %v1887
    %v2471 = vunpack.c.l.b16 %v1888
    %v2472 = vunpack.c.l.b16 %v1889
    %v2473 = vunpack.c.l.b16 %v1890
    %v2474 = vunpack.c.l.b16 %v1891
    %v2475 = vunpack.c.l.b16 %v1892
    %v2476 = vunpack.c.l.b16 %v1893
    %v2477 = vunpack.c.l.b16 %v1894
    %v2478 = vunpack.c.l.b16 %v1895
    %v2479 = vunpack.c.l.b16 %v1896
    %v2480 = vunpack.c.l.b16 %v1897
    %v2481 = vunpack.c.l.b16 %v1898
    %v2482 = vunpack.c.l.b16 %v1899
    %v2483 = vunpack.c.l.b16 %v1900
    %v2484 = vunpack.c.l.b16 %v1901
    %v2485 = vunpack.c.l.b16 %v1902
    %v2486 = vunpack.c.l.b16 %v1903
    %v2487 = vunpack.c.l.b16 %v1904
    %v2488 = vunpack.c.l.b16 %v1905
    %v2489 = vunpack.c.l.b16 %v1906
    %v2490 = vunpack.c.l.b16 %v1907
    %v2491 = vunpack.c.l.b16 %v1908
    %v2492 = vunpack.c.l.b16 %v1909
    %v2493 = vunpack.c.l.b16 %v1910
    %v2494 = vunpack.c.l.b16 %v1911
    %v2495 = vunpack.c.l.b16 %v1912
    %v2496 = vunpack.c.l.b16 %v1913
    %v2497 = vunpack.c.l.b16 %v1914
    %v2498 = vunpack.c.l.b16 %v1915
    %v2499 = vunpack.c.l.b16 %v1916
    %v2500 = vunpack.c.l.b16 %v1917
    %v2501 = vunpack.c.l.b16 %v1918
    %v2502 = vunpack.c.l.b16 %v1919
    %v2503 = vunpack.c.l.b16 %v1920
    %v2504 = vunpack.c.l.b16 %v1921
    %v2505 = vunpack.c.l.b16 %v1922
    %v2506 = vunpack.c.l.b16 %v1923
    %v2507 = vunpack.c.l.b16 %v1924
    %v2508 = vunpack.c.l.b16 %v1925
    %v2509 = vunpack.c.l.b16 %v1926
    %v2510 = vunpack.c.l.b16 %v1927
    %v2511 = vunpack.c.l.b16 %v1928
    %v2512 = vunpack.c.l.b16 %v1929
    %v2513 = vunpack.c.l.b16 %v1930
    %v2514 = vunpack.c.l.b16 %v1931
    %v2515 = vunpack.c.l.b16 %v1932
    %v2516 = vunpack.c.l.b16 %v1933
    %v2517 = vunpack.c.l.b16 %v1934
    %v2518 = vunpack.c.l.b16 %v1935
    %v2519 = vunpack.c.l.b16 %v1936
    %v2520 = vunpack.c.l.b16 %v1937
    %v2521 = vunpack.c.l.b16 %v1938
    %v2522 = vunpack.c.l.b16 %v1939
    %v2523 = vunpack.c.l.b16 %v1940
    %v2524 = vunpack.c.l.b16 %v1941
    %v2525 = vunpack.c.l.b16 %v1942
    %v2526 = vunpack.c.l.b16 %v1943
    %v2527 = vunpack.c.l.b16 %v1944
    %v2528 = vunpack.c.l.b16 %v1945
    %v2529 = vunpack.c.l.b16 %v1946
    %v2530 = vunpack.c.l.b16 %v1947
    %v2531 = vunpack.c.l.b16 %v1948
    %v2532 = vunpack.c.l.b16 %v1949
    %v2533 = vunpack.c.l.b16 %v1950
    %v2534 = vunpack.c.l.b16 %v1951
    %v2535 = vunpack.c.l.b16 %v1952
    %v2536 = vunpack.c.l.b16 %v1953
    %v2537 = vunpack.c.l.b16 %v1954
    %v2538 = vunpack.c.l.b16 %v1955
    %v2539 = vunpack.c.l.b16 %v1956
    %v2540 = vunpack.c.l.b16 %v1957
    %v2541 = vunpack.c.l.b16 %v1958
    %v2542 = vunpack.c.l.b16 %v1959
    %v2543 = vunpack.c.l.b16 %v1960
    %v2544 = vunpack.c.l.b16 %v1961
    %v2545 = vunpack.c.l.b16 %v1962
    %v2546 = vunpack.c.l.b16 %v1963
    %v2547 = vunpack.c.l.b16 %v1964
    %v2548 = vunpack.c.l.b16 %v1965
    %v2549 = vunpack.c.l.b16 %v1966
    %v2550 = vunpack.c.l.b16 %v1967
    %v2551 = vunpack.c.l.b16 %v1968
    %v2552 = vunpack.c.l.b16 %v1969
    %v2553 = vunpack.c.l.b16 %v1970
    %v2554 = vunpack.c.l.b16 %v1971
    %v2555 = vunpack.c.l.b16 %v1972
    %v2556 = vunpack.c.l.b16 %v1973
    %v2557 = vunpack.c.l.b16 %v1974
    %v2558 = vunpack.c.l.b16 %v1975
    %v2559 = vunpack.c.l.b16 %v1976
    %v2560 = vunpack.c.l.b16 %v1977
    %v2561 = vunpack.c.l.b16 %v1978
    %v2562 = vunpack.c.l.b16 %v1979
    %v2563 = vunpack.c.l.b16 %v1980
    %v2564 = vunpack.c.l.b16 %v1981
    %v2565 = vpack.c.b16 %v2316, %v2315
    %v2566 = vpack.c.b16 %v2318, %v2317
    %v2567 = vpack.c.b16 %v2320, %v2319
    %v2568 = vpack.c.b16 %v2322, %v2321
    %v2569 = vpack.c.b16 %v2324, %v2323
    %v2570 = vpack.c.b16 %v2326, %v2325
    %v2571 = vpack.c.b16 %v2328, %v2327
    %v2572 = vpack.c.b16 %v2330, %v2329
    %v2573 = vpack.c.b16 %v2332, %v2331
    %v2574 = vpack.c.b16 %v2334, %v2333
    %v2575 = vpack.c.b16 %v2336, %v2335
    %v2576 = vpack.c.b16 %v2338, %v2337
    %v2577 = vpack.c.b16 %v2340, %v2339
    %v2578 = vpack.c.b16 %v2342, %v2341
    %v2579 = vpack.c.b16 %v2344, %v2343
    %v2580 = vpack.c.b16 %v2346, %v2345
    %v2581 = vpack.c.b16 %v2348, %v2347
    %v2582 = vpack.c.b16 %v2350, %v2349
    %v2583 = vpack.c.b16 %v2352, %v2351
    %v2584 = vpack.c.b16 %v2354, %v2353
    %v2585 = vpack.c.b16 %v2356, %v2355
    %v2586 = vpack.c.b16 %v2358, %v2357
    %v2587 = vpack.c.b16 %v2360, %v2359
    %v2588 = vpack.c.b16 %v2362, %v2361
    %v2589 = vpack.c.b16 %v2364, %v2363
    %v2590 = vpack.c.b16 %v2366, %v2365
    %v2591 = vpack.c.b16 %v2368, %v2367
    %v2592 = vpack.c.b16 %v2370, %v2369
    %v2593 = vpack.c.b16 %v2372, %v2371
    %v2594 = vpack.c.b16 %v2374, %v2373
    %v2595 = vpack.c.b16 %v2376, %v2375
    %v2596 = vpack.c.b16 %v2378, %v2377
    %v2597 = vpack.c.b16 %v2380, %v2379
    %v2598 = vpack.c.b16 %v2382, %v2381
    %v2599 = vpack.c.b16 %v2384, %v2383
    %v2600 = vpack.c.b16 %v2386, %v2385
    %v2601 = vpack.c.b16 %v2388, %v2387
    %v2602 = vpack.c.b16 %v2390, %v2389
    %v2603 = vpack.c.b16 %v2392, %v2391
    %v2604 = vpack.c.b16 %v2394, %v2393
    %v2605 = vpack.c.b16 %v2396, %v2395
    %v2606 = vpack.c.b16 %v2398, %v2397
    %v2607 = vpack.c.b16 %v2400, %v2399
    %v2608 = vpack.c.b16 %v2402, %v2401
    %v2609 = vpack.c.b16 %v2404, %v2403
    %v2610 = vpack.c.b16 %v2406, %v2405
    %v2611 = vpack.c.b16 %v2408, %v2407
    %v2612 = vpack.c.b16 %v2410, %v2409
    %v2613 = vpack.c.b16 %v2412, %v2411
    %v2614 = vpack.c.b16 %v2414, %v2413
    %v2615 = vpack.c.b16 %v2416, %v2415
    %v2616 = vpack.c.b16 %v2418, %v2417
    %v2617 = vpack.c.b16 %v2420, %v2419
    %v2618 = vpack.c.b16 %v2422, %v2421
    %v2619 = vpack.c.b16 %v2424, %v2423
    %v2620 = vpack.c.b16 %v2426, %v2425
    %v2621 = vpack.c.b16 %v2428, %v2427
    %v2622 = vpack.c.b16 %v2430, %v2429
    %v2623 = vpack.c.b16 %v2432, %v2431
    %v2624 = vpack.c.b16 %v2434, %v2433
    %v2625 = vpack.c.b16 %v2436, %v2435
    %v2626 = vpack.c.b16 %v2438, %v2437
    %v2627 = vpack.c.b16 %v2440, %v2439
    %v2628 = vpack.c.b16 %v2442, %v2441
    %v2629 = vpack.c.b16 %v2444, %v2443
    %v2630 = vpack.c.b16 %v2446, %v2445
    %v2631 = vpack.c.b16 %v2448, %v2447
    %v2632 = vpack.c.b16 %v2450, %v2449
    %v2633 = vpack.c.b16 %v2452, %v2451
    %v2634 = vpack.c.b16 %v2454, %v2453
    %v2635 = vpack.c.b16 %v2456, %v2455
    %v2636 = vpack.c.b16 %v2458, %v2457
    %v2637 = vpack.c.b16 %v2460, %v2459
    %v2638 = vpack.c.b16 %v2462, %v2461
    %v2639 = vpack.c.b16 %v2464, %v2463
    %v2640 = vpack.c.b16 %v2466, %v2465
    %v2641 = vpack.c.b16 %v2468, %v2467
    %v2642 = vpack.c.b16 %v2470, %v2469
    %v2643 = vpack.c.b16 %v2472, %v2471
    %v2644 = vpack.c.b16 %v2474, %v2473
    %v2645 = vpack.c.b16 %v2476, %v2475
    %v2646 = vpack.c.b16 %v2478, %v2477
    %v2647 = vpack.c.b16 %v2480, %v2479
    %v2648 = vpack.c.b16 %v2482, %v2481
    %v2649 = vpack.c.b16 %v2484, %v2483
    %v2650 = vpack.c.b16 %v2486, %v2485
    %v2651 = vpack.c.b16 %v2488, %v2487
    %v2652 = vpack.c.b16 %v2490, %v2489
    %v2653 = vpack.c.b16 %v2492, %v2491
    %v2654 = vpack.c.b16 %v2494, %v2493
    %v2655 = vpack.c.b16 %v2496, %v2495
    %v2656 = vpack.c.b16 %v2498, %v2497
    %v2657 = vpack.c.b16 %v2500, %v2499
    %v2658 = vpack.c.b16 %v2502, %v2501
    %v2659 = vpack.c.b16 %v2504, %v2503
    %v2660 = vpack.c.b16 %v2506, %v2505
    %v2661 = vpack.c.b16 %v2508, %v2507
    %v2662 = vpack.c.b16 %v2510, %v2509
    %v2663 = vpack.c.b16 %v2512, %v2511
    %v2664 = vpack.c.b16 %v2514, %v2513
    %v2665 = vpack.c.b16 %v2516, %v2515
    %v2666 = vpack.c.b16 %v2518, %v2517
    %v2667 = vpack.c.b16 %v2520, %v2519
    %v2668 = vpack.c.b16 %v2522, %v2521
    %v2669 = vpack.c.b16 %v2524, %v2523
    %v2670 = vpack.c.b16 %v2526, %v2525
    %v2671 = vpack.c.b16 %v2528, %v2527
    %v2672 = vpack.c.b16 %v2530, %v2529
    %v2673 = vpack.c.b16 %v2532, %v2531
    %v2674 = vpack.c.b16 %v2534, %v2533
    %v2675 = vpack.c.b16 %v2536, %v2535
    %v2676 = vpack.c.b16 %v2538, %v2537
    %v2677 = vpack.c.b16 %v2540, %v2539
    %v2678 = vpack.c.b16 %v2542, %v2541
    %v2679 = vpack.c.b16 %v2544, %v2543
    %v2680 = vpack.c.b16 %v2546, %v2545
    %v2681 = vpack.c.b16 %v2548, %v2547
    %v2682 = vpack.c.b16 %v2550, %v2549
    %v2683 = vpack.c.b16 %v2552, %v2551
    %v2684 = vpack.c.b16 %v2554, %v2553
    %v2685 = vpack.c.b16 %v2556, %v2555
    %v2686 = vpack.c.b16 %v2558, %v2557
    %v2687 = vpack.c.b16 %v2560, %v2559
    %v2688 = vpack.c.b16 %v2562, %v2561
    %v2689 = vpack.c.b16 %v2564, %v2563
    %vm2815 = vcmask 654336
    %v2817 = vsel %vm2815, %v2049, 0
    %2819 = vmatpush.bf16.msra.mxu0 %v2572
    %2820 = vmatpush.bf16.msra.mxu0 %v2571
    %2821 = vmatpush.bf16.msra.mxu0 %v2570
    %2822 = vmatpush.bf16.msra.mxu0 %v2569
    %2823 = vmatpush.bf16.msra.mxu0 %v2568
    %2824 = vmatpush.bf16.msra.mxu0 %v2567
    %2825 = vmatpush.bf16.msra.mxu0 %v2566
    %2826 = vmatpush.bf16.msra.mxu0 %v2565
    %2827 = vmatmul.bf16.gmra.mxu0 %v2034
    %v2828 = vpop.f32.mrf.mxu0
    %v2829 = vadd.f32 %v1984, %v2828
    %v2830 = vpop.f32.mrf.mxu0
    %v2831 = vadd.f32 %v1984, %v2830
    %2832 = vdwg.mxu0
    %2833 = vmatpush.bf16.msra.mxu0 %v2580
    %2834 = vmatpush.bf16.msra.mxu0 %v2579
    %2835 = vmatpush.bf16.msra.mxu0 %v2578
    %2836 = vmatpush.bf16.msra.mxu0 %v2577
    %2837 = vmatpush.bf16.msra.mxu0 %v2576
    %2838 = vmatpush.bf16.msra.mxu0 %v2575
    %2839 = vmatpush.bf16.msra.mxu0 %v2574
    %2840 = vmatpush.bf16.msra.mxu0 %v2573
    %2841 = vmatmul.bf16.gmra.mxu0 %v2035
    %v2842 = vpop.f32.mrf.mxu0
    %v2843 = vadd.f32 %v2829, %v2842
    %v2844 = vpop.f32.mrf.mxu0
    %v2845 = vadd.f32 %v2831, %v2844
    %2846 = vdwg.mxu0
    %2847 = vmatpush.bf16.msra.mxu0 %v2588
    %2848 = vmatpush.bf16.msra.mxu0 %v2587
    %2849 = vmatpush.bf16.msra.mxu0 %v2586
    %2850 = vmatpush.bf16.msra.mxu0 %v2585
    %2851 = vmatpush.bf16.msra.mxu0 %v2584
    %2852 = vmatpush.bf16.msra.mxu0 %v2583
    %2853 = vmatpush.bf16.msra.mxu0 %v2582
    %2854 = vmatpush.bf16.msra.mxu0 %v2581
    %2855 = vmatmul.bf16.gmra.mxu0 %v2036
    %v2856 = vpop.f32.mrf.mxu0
    %v2857 = vadd.f32 %v2843, %v2856
    %v2858 = vpop.f32.mrf.mxu0
    %v2859 = vadd.f32 %v2845, %v2858
    %2860 = vdwg.mxu0
    %2861 = vmatpush.bf16.msra.mxu0 %v2596
    %2862 = vmatpush.bf16.msra.mxu0 %v2595
    %2863 = vmatpush.bf16.msra.mxu0 %v2594
    %2864 = vmatpush.bf16.msra.mxu0 %v2593
    %2865 = vmatpush.bf16.msra.mxu0 %v2592
    %2866 = vmatpush.bf16.msra.mxu0 %v2591
    %2867 = vmatpush.bf16.msra.mxu0 %v2590
    %2868 = vmatpush.bf16.msra.mxu0 %v2589
    %2869 = vmatmul.bf16.gmra.mxu0 %v2037
    %v2870 = vpop.f32.mrf.mxu0
    %v2871 = vadd.f32 %v2857, %v2870
    %v2872 = vpop.f32.mrf.mxu0
    %v2873 = vadd.f32 %v2859, %v2872
    %2874 = vdwg.mxu0
    %2875 = vmatpush.bf16.msra.mxu0 %v2604
    %2876 = vmatpush.bf16.msra.mxu0 %v2603
    %2877 = vmatpush.bf16.msra.mxu0 %v2602
    %2878 = vmatpush.bf16.msra.mxu0 %v2601
    %2879 = vmatpush.bf16.msra.mxu0 %v2600
    %2880 = vmatpush.bf16.msra.mxu0 %v2599
    %2881 = vmatpush.bf16.msra.mxu0 %v2598
    %2882 = vmatpush.bf16.msra.mxu0 %v2597
    %2883 = vmatmul.bf16.gmra.mxu0 %v2038
    %v2884 = vpop.f32.mrf.mxu0
    %v2885 = vadd.f32 %v2871, %v2884
    %v2886 = vpop.f32.mrf.mxu0
    %v2887 = vadd.f32 %v2873, %v2886
    %2888 = vdwg.mxu0
    %2889 = vmatpush.bf16.msra.mxu0 %v2612
    %2890 = vmatpush.bf16.msra.mxu0 %v2611
    %2891 = vmatpush.bf16.msra.mxu0 %v2610
    %2892 = vmatpush.bf16.msra.mxu0 %v2609
    %2893 = vmatpush.bf16.msra.mxu0 %v2608
    %2894 = vmatpush.bf16.msra.mxu0 %v2607
    %2895 = vmatpush.bf16.msra.mxu0 %v2606
    %2896 = vmatpush.bf16.msra.mxu0 %v2605
    %2897 = vmatmul.bf16.gmra.mxu0 %v2039
    %v2898 = vpop.f32.mrf.mxu0
    %v2899 = vadd.f32 %v2885, %v2898
    %v2900 = vpop.f32.mrf.mxu0
    %v2901 = vadd.f32 %v2887, %v2900
    %2902 = vdwg.mxu0
    %2903 = vmatpush.bf16.msra.mxu0 %v2620
    %2904 = vmatpush.bf16.msra.mxu0 %v2619
    %2905 = vmatpush.bf16.msra.mxu0 %v2618
    %2906 = vmatpush.bf16.msra.mxu0 %v2617
    %2907 = vmatpush.bf16.msra.mxu0 %v2616
    %2908 = vmatpush.bf16.msra.mxu0 %v2615
    %2909 = vmatpush.bf16.msra.mxu0 %v2614
    %2910 = vmatpush.bf16.msra.mxu0 %v2613
    %2911 = vmatmul.bf16.gmra.mxu0 %v2040
    %v2912 = vpop.f32.mrf.mxu0
    %v2913 = vadd.f32 %v2899, %v2912
    %v2914 = vpop.f32.mrf.mxu0
    %v2915 = vadd.f32 %v2901, %v2914
    %2916 = vdwg.mxu0
    %2917 = vmatpush.bf16.msra.mxu0 %v2628
    %2918 = vmatpush.bf16.msra.mxu0 %v2627
    %2919 = vmatpush.bf16.msra.mxu0 %v2626
    %2920 = vmatpush.bf16.msra.mxu0 %v2625
    %2921 = vmatpush.bf16.msra.mxu0 %v2624
    %2922 = vmatpush.bf16.msra.mxu0 %v2623
    %2923 = vmatpush.bf16.msra.mxu0 %v2622
    %2924 = vmatpush.bf16.msra.mxu0 %v2621
    %2925 = vmatmul.bf16.gmra.mxu0 %v2041
    %v2926 = vpop.f32.mrf.mxu0
    %v2927 = vadd.f32 %v2913, %v2926
    %v2928 = vpop.f32.mrf.mxu0
    %v2929 = vadd.f32 %v2915, %v2928
    %2930 = vdwg.mxu0
    %2931 = vmatpush.bf16.msra.mxu0 %v2636
    %2932 = vmatpush.bf16.msra.mxu0 %v2635
    %2933 = vmatpush.bf16.msra.mxu0 %v2634
    %2934 = vmatpush.bf16.msra.mxu0 %v2633
    %2935 = vmatpush.bf16.msra.mxu0 %v2632
    %2936 = vmatpush.bf16.msra.mxu0 %v2631
    %2937 = vmatpush.bf16.msra.mxu0 %v2630
    %2938 = vmatpush.bf16.msra.mxu0 %v2629
    %2939 = vmatmul.bf16.gmra.mxu0 %v2042
    %v2940 = vpop.f32.mrf.mxu0
    %v2941 = vadd.f32 %v2927, %v2940
    %v2942 = vpop.f32.mrf.mxu0
    %v2943 = vadd.f32 %v2929, %v2942
    %2944 = vdwg.mxu0
    %2945 = vmatpush.bf16.msra.mxu0 %v2644
    %2946 = vmatpush.bf16.msra.mxu0 %v2643
    %2947 = vmatpush.bf16.msra.mxu0 %v2642
    %2948 = vmatpush.bf16.msra.mxu0 %v2641
    %2949 = vmatpush.bf16.msra.mxu0 %v2640
    %2950 = vmatpush.bf16.msra.mxu0 %v2639
    %2951 = vmatpush.bf16.msra.mxu0 %v2638
    %2952 = vmatpush.bf16.msra.mxu0 %v2637
    %2953 = vmatmul.bf16.gmra.mxu0 %v2043
    %v2954 = vpop.f32.mrf.mxu0
    %v2955 = vadd.f32 %v2941, %v2954
    %v2956 = vpop.f32.mrf.mxu0
    %v2957 = vadd.f32 %v2943, %v2956
    %2958 = vdwg.mxu0
    %2959 = vmatpush.bf16.msra.mxu0 %v2652
    %2960 = vmatpush.bf16.msra.mxu0 %v2651
    %2961 = vmatpush.bf16.msra.mxu0 %v2650
    %2962 = vmatpush.bf16.msra.mxu0 %v2649
    %2963 = vmatpush.bf16.msra.mxu0 %v2648
    %2964 = vmatpush.bf16.msra.mxu0 %v2647
    %2965 = vmatpush.bf16.msra.mxu0 %v2646
    %2966 = vmatpush.bf16.msra.mxu0 %v2645
    %2967 = vmatmul.bf16.gmra.mxu0 %v2044
    %v2968 = vpop.f32.mrf.mxu0
    %v2969 = vadd.f32 %v2955, %v2968
    %v2970 = vpop.f32.mrf.mxu0
    %v2971 = vadd.f32 %v2957, %v2970
    %2972 = vdwg.mxu0
    %2973 = vmatpush.bf16.msra.mxu0 %v2660
    %2974 = vmatpush.bf16.msra.mxu0 %v2659
    %2975 = vmatpush.bf16.msra.mxu0 %v2658
    %2976 = vmatpush.bf16.msra.mxu0 %v2657
    %2977 = vmatpush.bf16.msra.mxu0 %v2656
    %2978 = vmatpush.bf16.msra.mxu0 %v2655
    %2979 = vmatpush.bf16.msra.mxu0 %v2654
    %2980 = vmatpush.bf16.msra.mxu0 %v2653
    %2981 = vmatmul.bf16.gmra.mxu0 %v2045
    %v2982 = vpop.f32.mrf.mxu0
    %v2983 = vadd.f32 %v2969, %v2982
    %v2984 = vpop.f32.mrf.mxu0
    %v2985 = vadd.f32 %v2971, %v2984
    %2986 = vdwg.mxu0
    %2987 = vmatpush.bf16.msra.mxu0 %v2668
    %2988 = vmatpush.bf16.msra.mxu0 %v2667
    %2989 = vmatpush.bf16.msra.mxu0 %v2666
    %2990 = vmatpush.bf16.msra.mxu0 %v2665
    %2991 = vmatpush.bf16.msra.mxu0 %v2664
    %2992 = vmatpush.bf16.msra.mxu0 %v2663
    %2993 = vmatpush.bf16.msra.mxu0 %v2662
    %2994 = vmatpush.bf16.msra.mxu0 %v2661
    %2995 = vmatmul.bf16.gmra.mxu0 %v2046
    %v2996 = vpop.f32.mrf.mxu0
    %v2997 = vadd.f32 %v2983, %v2996
    %v2998 = vpop.f32.mrf.mxu0
    %v2999 = vadd.f32 %v2985, %v2998
    %3000 = vdwg.mxu0
    %3001 = vmatpush.bf16.msra.mxu0 %v2676
    %3002 = vmatpush.bf16.msra.mxu0 %v2675
    %3003 = vmatpush.bf16.msra.mxu0 %v2674
    %3004 = vmatpush.bf16.msra.mxu0 %v2673
    %3005 = vmatpush.bf16.msra.mxu0 %v2672
    %3006 = vmatpush.bf16.msra.mxu0 %v2671
    %3007 = vmatpush.bf16.msra.mxu0 %v2670
    %3008 = vmatpush.bf16.msra.mxu0 %v2669
    %3009 = vmatmul.bf16.gmra.mxu0 %v2047
    %v3010 = vpop.f32.mrf.mxu0
    %v3011 = vadd.f32 %v2997, %v3010
    %v3012 = vpop.f32.mrf.mxu0
    %v3013 = vadd.f32 %v2999, %v3012
    %3014 = vdwg.mxu0
    %3015 = vmatpush.bf16.msra.mxu0 %v2684
    %3016 = vmatpush.bf16.msra.mxu0 %v2683
    %3017 = vmatpush.bf16.msra.mxu0 %v2682
    %3018 = vmatpush.bf16.msra.mxu0 %v2681
    %3019 = vmatpush.bf16.msra.mxu0 %v2680
    %3020 = vmatpush.bf16.msra.mxu0 %v2679
    %3021 = vmatpush.bf16.msra.mxu0 %v2678
    %3022 = vmatpush.bf16.msra.mxu0 %v2677
    %3023 = vmatmul.bf16.gmra.mxu0 %v2048
    %v3024 = vpop.f32.mrf.mxu0
    %v3025 = vadd.f32 %v3011, %v3024
    %v3026 = vpop.f32.mrf.mxu0
    %v3027 = vadd.f32 %v3013, %v3026
    %3028 = vdwg.mxu0
    %3029 = vmatpush.bf16.msra.mxu0 0
    %3030 = vmatpush.bf16.msra.mxu0 0
    %3031 = vmatpush.bf16.msra.mxu0 0
    %3032 = vmatpush.bf16.msra.mxu0 %v2689
    %3033 = vmatpush.bf16.msra.mxu0 %v2688
    %3034 = vmatpush.bf16.msra.mxu0 %v2687
    %3035 = vmatpush.bf16.msra.mxu0 %v2686
    %3036 = vmatpush.bf16.msra.mxu0 %v2685
    %3037 = vmatmul.bf16.gmra.mxu0 %v2817
    %v3038 = vpop.f32.mrf.mxu0
    %v3039 = vadd.f32 %v3025, %v3038
    %v3040 = vpop.f32.mrf.mxu0
    %v3041 = vadd.f32 %v3027, %v3040
    %3042 = vdwg.mxu0
    %v3043 = vmax.f32 %v3039, 0.0
    %v3044 = vmax.f32 %v3041, 0.0
    %v3045 = vpack.c.bf16 %v1715, %v1714
    %v3046 = vld [vmem:[#allocation10] sm:$0xff]
    %v3047 = vld [vmem:[#allocation10 + $0x8] sm:$0xf]
    %v3048 = vld [vmem:[#allocation10 + $0xc] sm:$0xff]
    %v3049 = vld [vmem:[#allocation10 + $0x14] sm:$0xf]
    %v3050 = vld [vmem:[#allocation10 + $0x18] sm:$0xff]
    %v3051 = vld [vmem:[#allocation10 + $0x20] sm:$0xf]
    %v3052 = vld [vmem:[#allocation10 + $0x24] sm:$0xff]
    %v3053 = vld [vmem:[#allocation10 + $0x2c] sm:$0xf]
    %v3054 = vld [vmem:[#allocation10 + $0x30] sm:$0xff]
    %v3055 = vld [vmem:[#allocation10 + $0x38] sm:$0xf]
    %v3056 = vld [vmem:[#allocation10 + $0x3c] sm:$0xff]
    %v3057 = vld [vmem:[#allocation10 + $0x44] sm:$0xf]
    %v3058 = vld [vmem:[#allocation10 + $0x48] sm:$0xff]
    %v3059 = vld [vmem:[#allocation10 + $0x50] sm:$0xf]
    %v3060 = vld [vmem:[#allocation10 + $0x54] sm:$0xff]
    %v3061 = vld [vmem:[#allocation10 + $0x5c] sm:$0xf]
    %v3062 = vld [vmem:[#allocation10 + $0x60] sm:$0xff]
    %v3063 = vld [vmem:[#allocation10 + $0x68] sm:$0xf]
    %v3064 = vld [vmem:[#allocation10 + $0x6c] sm:$0xff]
    %v3065 = vld [vmem:[#allocation10 + $0x74] sm:$0xf]
    %v3066 = vld [vmem:[#allocation10 + $0x78] sm:$0xff]
    %v3067 = vld [vmem:[#allocation10 + $0x80] sm:$0xf]
    %v3068 = vld [vmem:[#allocation10 + $0x84] sm:$0xff]
    %v3069 = vld [vmem:[#allocation10 + $0x8c] sm:$0xf]
    %v3070 = vld [vmem:[#allocation10 + $0x90] sm:$0xff]
    %v3071 = vld [vmem:[#allocation10 + $0x98] sm:$0xf]
    %v3072 = vld [vmem:[#allocation10 + $0x9c] sm:$0xff]
    %v3073 = vld [vmem:[#allocation10 + $0xa4] sm:$0xf]
    %v3074 = vld [vmem:[#allocation10 + $0xa8] sm:$0xff]
    %v3075 = vld [vmem:[#allocation10 + $0xb0] sm:$0xf]
    %v3076 = vld [vmem:[#allocation10 + $0xb4] sm:$0xff]
    %v3077 = vld [vmem:[#allocation10 + $0xbc] sm:$0xf]
    %v3078 = vpack.c.bf16 %v3044, %v3043
    %v3079 = vld [vmem:[#allocation11] sm:$0xff]
    %v3080 = vld [vmem:[#allocation11 + $0x8] sm:$0xf]
    %v3081 = vld [vmem:[#allocation11 + $0xc] sm:$0xff]
    %v3082 = vld [vmem:[#allocation11 + $0x14] sm:$0xf]
    %v3083 = vld [vmem:[#allocation11 + $0x18] sm:$0xff]
    %v3084 = vld [vmem:[#allocation11 + $0x20] sm:$0xf]
    %v3085 = vld [vmem:[#allocation11 + $0x24] sm:$0xff]
    %v3086 = vld [vmem:[#allocation11 + $0x2c] sm:$0xf]
    %v3087 = vld [vmem:[#allocation11 + $0x30] sm:$0xff]
    %v3088 = vld [vmem:[#allocation11 + $0x38] sm:$0xf]
    %v3089 = vld [vmem:[#allocation11 + $0x3c] sm:$0xff]
    %v3090 = vld [vmem:[#allocation11 + $0x44] sm:$0xf]
    %v3091 = vld [vmem:[#allocation11 + $0x48] sm:$0xff]
    %v3092 = vld [vmem:[#allocation11 + $0x50] sm:$0xf]
    %v3093 = vld [vmem:[#allocation11 + $0x54] sm:$0xff]
    %v3094 = vld [vmem:[#allocation11 + $0x5c] sm:$0xf]
    %v3095 = vld [vmem:[#allocation11 + $0x60] sm:$0xff]
    %v3096 = vld [vmem:[#allocation11 + $0x68] sm:$0xf]
    %v3097 = vld [vmem:[#allocation11 + $0x6c] sm:$0xff]
    %v3098 = vld [vmem:[#allocation11 + $0x74] sm:$0xf]
    %v3099 = vld [vmem:[#allocation11 + $0x78] sm:$0xff]
    %v3100 = vld [vmem:[#allocation11 + $0x80] sm:$0xf]
    %v3101 = vld [vmem:[#allocation11 + $0x84] sm:$0xff]
    %v3102 = vld [vmem:[#allocation11 + $0x8c] sm:$0xf]
    %v3103 = vld [vmem:[#allocation11 + $0x90] sm:$0xff]
    %v3104 = vld [vmem:[#allocation11 + $0x98] sm:$0xf]
    %v3105 = vld [vmem:[#allocation11 + $0x9c] sm:$0xff]
    %v3106 = vld [vmem:[#allocation11 + $0xa4] sm:$0xf]
    %v3107 = vld [vmem:[#allocation11 + $0xa8] sm:$0xff]
    %v3108 = vld [vmem:[#allocation11 + $0xb0] sm:$0xf]
    %v3109 = vld [vmem:[#allocation11 + $0xb4] sm:$0xff]
    %v3110 = vld [vmem:[#allocation11 + $0xbc] sm:$0xf]
    %v3143 = vunpack.c.l.b16 %v3079
    %v3144 = vunpack.c.h.b16 %v3079
    %v3145 = vunpack.c.l.b16 %v3080
    %v3146 = vunpack.c.l.b16 %v3081
    %v3147 = vunpack.c.h.b16 %v3081
    %v3148 = vunpack.c.l.b16 %v3082
    %v3149 = vunpack.c.l.b16 %v3083
    %v3150 = vunpack.c.h.b16 %v3083
    %v3151 = vunpack.c.l.b16 %v3084
    %v3152 = vunpack.c.l.b16 %v3085
    %v3153 = vunpack.c.h.b16 %v3085
    %v3154 = vunpack.c.l.b16 %v3086
    %v3155 = vunpack.c.l.b16 %v3087
    %v3156 = vunpack.c.h.b16 %v3087
    %v3157 = vunpack.c.l.b16 %v3088
    %v3158 = vunpack.c.l.b16 %v3089
    %v3159 = vunpack.c.h.b16 %v3089
    %v3160 = vunpack.c.l.b16 %v3090
    %v3161 = vunpack.c.l.b16 %v3091
    %v3162 = vunpack.c.h.b16 %v3091
    %v3163 = vunpack.c.l.b16 %v3092
    %v3164 = vunpack.c.l.b16 %v3093
    %v3165 = vunpack.c.h.b16 %v3093
    %v3166 = vunpack.c.l.b16 %v3094
    %v3167 = vunpack.c.l.b16 %v3095
    %v3168 = vunpack.c.h.b16 %v3095
    %v3169 = vunpack.c.l.b16 %v3096
    %v3170 = vunpack.c.l.b16 %v3097
    %v3171 = vunpack.c.h.b16 %v3097
    %v3172 = vunpack.c.l.b16 %v3098
    %v3173 = vunpack.c.l.b16 %v3099
    %v3174 = vunpack.c.h.b16 %v3099
    %v3175 = vunpack.c.l.b16 %v3100
    %v3176 = vunpack.c.l.b16 %v3101
    %v3177 = vunpack.c.h.b16 %v3101
    %v3178 = vunpack.c.l.b16 %v3102
    %v3179 = vunpack.c.l.b16 %v3103
    %v3180 = vunpack.c.h.b16 %v3103
    %v3181 = vunpack.c.l.b16 %v3104
    %v3182 = vunpack.c.l.b16 %v3105
    %v3183 = vunpack.c.h.b16 %v3105
    %v3184 = vunpack.c.l.b16 %v3106
    %v3185 = vunpack.c.l.b16 %v3107
    %v3186 = vunpack.c.h.b16 %v3107
    %v3187 = vunpack.c.l.b16 %v3108
    %v3188 = vunpack.c.l.b16 %v3109
    %v3189 = vunpack.c.h.b16 %v3109
    %v3190 = vunpack.c.l.b16 %v3110
    %v3191 = vpack.c.b16 %v3146, %v3143
    %v3192 = vpack.c.b16 %v3147, %v3144
    %v3193 = vpack.c.b16 %v3148, %v3145
    %v3194 = vpack.c.b16 %v3152, %v3149
    %v3195 = vpack.c.b16 %v3153, %v3150
    %v3196 = vpack.c.b16 %v3154, %v3151
    %v3197 = vpack.c.b16 %v3158, %v3155
    %v3198 = vpack.c.b16 %v3159, %v3156
    %v3199 = vpack.c.b16 %v3160, %v3157
    %v3200 = vpack.c.b16 %v3164, %v3161
    %v3201 = vpack.c.b16 %v3165, %v3162
    %v3202 = vpack.c.b16 %v3166, %v3163
    %v3203 = vpack.c.b16 %v3170, %v3167
    %v3204 = vpack.c.b16 %v3171, %v3168
    %v3205 = vpack.c.b16 %v3172, %v3169
    %v3206 = vpack.c.b16 %v3176, %v3173
    %v3207 = vpack.c.b16 %v3177, %v3174
    %v3208 = vpack.c.b16 %v3178, %v3175
    %v3209 = vpack.c.b16 %v3182, %v3179
    %v3210 = vpack.c.b16 %v3183, %v3180
    %v3211 = vpack.c.b16 %v3184, %v3181
    %v3212 = vpack.c.b16 %v3188, %v3185
    %v3213 = vpack.c.b16 %v3189, %v3186
    %v3214 = vpack.c.b16 %v3190, %v3187
    %3239 = vmatpush.bf16.msra.mxu0 %v3212
    %3240 = vmatpush.bf16.msra.mxu0 %v3209
    %3241 = vmatpush.bf16.msra.mxu0 %v3206
    %3242 = vmatpush.bf16.msra.mxu0 %v3203
    %3243 = vmatpush.bf16.msra.mxu0 %v3200
    %3244 = vmatpush.bf16.msra.mxu0 %v3197
    %3245 = vmatpush.bf16.msra.mxu0 %v3194
    %3246 = vmatpush.bf16.msra.mxu0 %v3191
    %3247 = vmatmul.bf16.gmra.mxu0 %v3078
    %v3248 = vpop.f32.mrf.mxu0
    %v3249 = vadd.f32 0.0, %v3248
    %v3250 = vpop.f32.mrf.mxu0
    %v3251 = vadd.f32 0.0, %v3250
    %3252 = vdwg.mxu0
    %3253 = vmatpush.bf16.msra.mxu0 %v3213
    %3254 = vmatpush.bf16.msra.mxu0 %v3210
    %3255 = vmatpush.bf16.msra.mxu0 %v3207
    %3256 = vmatpush.bf16.msra.mxu0 %v3204
    %3257 = vmatpush.bf16.msra.mxu0 %v3201
    %3258 = vmatpush.bf16.msra.mxu0 %v3198
    %3259 = vmatpush.bf16.msra.mxu0 %v3195
    %3260 = vmatpush.bf16.msra.mxu0 %v3192
    %3261 = vmatmul.bf16.gmra.mxu0 %v3078
    %v3262 = vpop.f32.mrf.mxu0
    %v3263 = vadd.f32 0.0, %v3262
    %v3264 = vpop.f32.mrf.mxu0
    %v3265 = vadd.f32 0.0, %v3264
    %3266 = vdwg.mxu0
    %3267 = vmatpush.bf16.msra.mxu0 %v3214
    %3268 = vmatpush.bf16.msra.mxu0 %v3211
    %3269 = vmatpush.bf16.msra.mxu0 %v3208
    %3270 = vmatpush.bf16.msra.mxu0 %v3205
    %3271 = vmatpush.bf16.msra.mxu0 %v3202
    %3272 = vmatpush.bf16.msra.mxu0 %v3199
    %3273 = vmatpush.bf16.msra.mxu0 %v3196
    %3274 = vmatpush.bf16.msra.mxu0 %v3193
    %3275 = vmatmul.bf16.gmra.mxu0 %v3078
    %v3276 = vpop.f32.mrf.mxu0
    %v3277 = vadd.f32 0.0, %v3276
    %v3278 = vpop.f32.mrf.mxu0
    %v3279 = vadd.f32 0.0, %v3278
    %3280 = vdwg.mxu0
    %v3313 = vunpack.c.l.b16 %v3046
    %v3314 = vunpack.c.h.b16 %v3046
    %v3315 = vunpack.c.l.b16 %v3047
    %v3316 = vunpack.c.l.b16 %v3048
    %v3317 = vunpack.c.h.b16 %v3048
    %v3318 = vunpack.c.l.b16 %v3049
    %v3319 = vunpack.c.l.b16 %v3050
    %v3320 = vunpack.c.h.b16 %v3050
    %v3321 = vunpack.c.l.b16 %v3051
    %v3322 = vunpack.c.l.b16 %v3052
    %v3323 = vunpack.c.h.b16 %v3052
    %v3324 = vunpack.c.l.b16 %v3053
    %v3325 = vunpack.c.l.b16 %v3054
    %v3326 = vunpack.c.h.b16 %v3054
    %v3327 = vunpack.c.l.b16 %v3055
    %v3328 = vunpack.c.l.b16 %v3056
    %v3329 = vunpack.c.h.b16 %v3056
    %v3330 = vunpack.c.l.b16 %v3057
    %v3331 = vunpack.c.l.b16 %v3058
    %v3332 = vunpack.c.h.b16 %v3058
    %v3333 = vunpack.c.l.b16 %v3059
    %v3334 = vunpack.c.l.b16 %v3060
    %v3335 = vunpack.c.h.b16 %v3060
    %v3336 = vunpack.c.l.b16 %v3061
    %v3337 = vunpack.c.l.b16 %v3062
    %v3338 = vunpack.c.h.b16 %v3062
    %v3339 = vunpack.c.l.b16 %v3063
    %v3340 = vunpack.c.l.b16 %v3064
    %v3341 = vunpack.c.h.b16 %v3064
    %v3342 = vunpack.c.l.b16 %v3065
    %v3343 = vunpack.c.l.b16 %v3066
    %v3344 = vunpack.c.h.b16 %v3066
    %v3345 = vunpack.c.l.b16 %v3067
    %v3346 = vunpack.c.l.b16 %v3068
    %v3347 = vunpack.c.h.b16 %v3068
    %v3348 = vunpack.c.l.b16 %v3069
    %v3349 = vunpack.c.l.b16 %v3070
    %v3350 = vunpack.c.h.b16 %v3070
    %v3351 = vunpack.c.l.b16 %v3071
    %v3352 = vunpack.c.l.b16 %v3072
    %v3353 = vunpack.c.h.b16 %v3072
    %v3354 = vunpack.c.l.b16 %v3073
    %v3355 = vunpack.c.l.b16 %v3074
    %v3356 = vunpack.c.h.b16 %v3074
    %v3357 = vunpack.c.l.b16 %v3075
    %v3358 = vunpack.c.l.b16 %v3076
    %v3359 = vunpack.c.h.b16 %v3076
    %v3360 = vunpack.c.l.b16 %v3077
    %v3361 = vpack.c.b16 %v3316, %v3313
    %v3362 = vpack.c.b16 %v3317, %v3314
    %v3363 = vpack.c.b16 %v3318, %v3315
    %v3364 = vpack.c.b16 %v3322, %v3319
    %v3365 = vpack.c.b16 %v3323, %v3320
    %v3366 = vpack.c.b16 %v3324, %v3321
    %v3367 = vpack.c.b16 %v3328, %v3325
    %v3368 = vpack.c.b16 %v3329, %v3326
    %v3369 = vpack.c.b16 %v3330, %v3327
    %v3370 = vpack.c.b16 %v3334, %v3331
    %v3371 = vpack.c.b16 %v3335, %v3332
    %v3372 = vpack.c.b16 %v3336, %v3333
    %v3373 = vpack.c.b16 %v3340, %v3337
    %v3374 = vpack.c.b16 %v3341, %v3338
    %v3375 = vpack.c.b16 %v3342, %v3339
    %v3376 = vpack.c.b16 %v3346, %v3343
    %v3377 = vpack.c.b16 %v3347, %v3344
    %v3378 = vpack.c.b16 %v3348, %v3345
    %v3379 = vpack.c.b16 %v3352, %v3349
    %v3380 = vpack.c.b16 %v3353, %v3350
    %v3381 = vpack.c.b16 %v3354, %v3351
    %v3382 = vpack.c.b16 %v3358, %v3355
    %v3383 = vpack.c.b16 %v3359, %v3356
    %v3384 = vpack.c.b16 %v3360, %v3357
    %3409 = vmatpush.bf16.msra.mxu0 %v3382
    %3410 = vmatpush.bf16.msra.mxu0 %v3379
    %3411 = vmatpush.bf16.msra.mxu0 %v3376
    %3412 = vmatpush.bf16.msra.mxu0 %v3373
    %3413 = vmatpush.bf16.msra.mxu0 %v3370
    %3414 = vmatpush.bf16.msra.mxu0 %v3367
    %3415 = vmatpush.bf16.msra.mxu0 %v3364
    %3416 = vmatpush.bf16.msra.mxu0 %v3361
    %3417 = vmatmul.bf16.gmra.mxu0 %v3045
    %v3418 = vpop.f32.mrf.mxu0
    %v3419 = vadd.f32 %v3249, %v3418
    %v3420 = vpop.f32.mrf.mxu0
    %v3421 = vadd.f32 %v3251, %v3420
    %3422 = vdwg.mxu0
    %3423 = vmatpush.bf16.msra.mxu0 %v3383
    %3424 = vmatpush.bf16.msra.mxu0 %v3380
    %3425 = vmatpush.bf16.msra.mxu0 %v3377
    %3426 = vmatpush.bf16.msra.mxu0 %v3374
    %3427 = vmatpush.bf16.msra.mxu0 %v3371
    %3428 = vmatpush.bf16.msra.mxu0 %v3368
    %3429 = vmatpush.bf16.msra.mxu0 %v3365
    %3430 = vmatpush.bf16.msra.mxu0 %v3362
    %3431 = vmatmul.bf16.gmra.mxu0 %v3045
    %v3432 = vpop.f32.mrf.mxu0
    %v3433 = vadd.f32 %v3263, %v3432
    %v3434 = vpop.f32.mrf.mxu0
    %v3435 = vadd.f32 %v3265, %v3434
    %3436 = vdwg.mxu0
    %3437 = vmatpush.bf16.msra.mxu0 %v3384
    %3438 = vmatpush.bf16.msra.mxu0 %v3381
    %3439 = vmatpush.bf16.msra.mxu0 %v3378
    %3440 = vmatpush.bf16.msra.mxu0 %v3375
    %3441 = vmatpush.bf16.msra.mxu0 %v3372
    %3442 = vmatpush.bf16.msra.mxu0 %v3369
    %3443 = vmatpush.bf16.msra.mxu0 %v3366
    %3444 = vmatpush.bf16.msra.mxu0 %v3363
    %3445 = vmatmul.bf16.gmra.mxu0 %v3045
    %v3446 = vpop.f32.mrf.mxu0
    %v3447 = vadd.f32 %v3277, %v3446
    %v3448 = vpop.f32.mrf.mxu0
    %v3449 = vadd.f32 %v3279, %v3448
    %3450 = vdwg.mxu0
    %v3451 = vpack.c.bf16 %v3433, %v3419
    %v3452 = vpack.c.bf16 %v3447, %v3447
    %v3453 = vpack.c.bf16 %v3435, %v3421
    %v3454 = vpack.c.bf16 %v3449, %v3449
    %3455 = vst [vmem:[#allocation13] sm:$0xff] %v3451
    %3456 = vst [vmem:[#allocation13 + $0x8] sm:$0xf] %v3452
    %3457 = vst [vmem:[#allocation13 + $0xc] sm:$0xff] %v3453
    %3458 = vst [vmem:[#allocation13 + $0x14] sm:$0xf] %v3454
    // Predicated region
    $region58: #{tpu_custom_call.1} parent=1 // pred_check
      _
    $region59: #{tpu_custom_call.1} parent=1 // pred_check_branch
      %3460 = sbr.rel (0) target = $region61
    $region60: #{tpu_custom_call.1} parent=1 // pred_region
      %3462 = vsyncadd [#allocation4], 0
      %s3463 = sshll.u32 [#allocation13], 4
      %s3464 = int_to_ptr.vmem [resolvable:$true] %s3463
      %s3465 = sshll.u32 %s8, 4
      %s3466 = int_to_ptr.hbm [resolvable:$true] %s3465
      %3471 = dma.vmem_to_hbm [thread:$0]  %s3464, 384, %s3466, [#allocation4], 192, 192, 12
    $region61: #{tpu_custom_call.1} parent=1 // pred_fallthru
      _
    // Predicated region
    $region62: #{tpu_custom_call.1} parent=1 // pred_check
      _
    $region63: #{tpu_custom_call.1} parent=1 // pred_check_branch
      %3473 = sbr.rel (0) target = $region65
    $region64: #{tpu_custom_call.1} parent=1 // pred_region
      %3475 = dma.done [#allocation4], 384
    $region65: #{tpu_custom_call.1} parent=1 // pred_fallthru
      _
    %3476 = vsyncpa [#allocation3], 1
    %3477 = vsyncpa [#allocation6], 1
    %3478 = vsyncpa [#allocation9], 1
    %3479 = vsyncpa [#allocation12], 1
    %3480 = vsyncpa [#allocation4], 1

</llo_original>
